<compile_context>
chip_gen: v7x
topology: tpu7x:2x2x1
jax: 0.10.0
libtpu: 0.0.40
codegen_flags: <defaults>
</compile_context>

<pallas_src>
import numpy as np
import jax
import jax.numpy as jnp
from jax.experimental import pallas as pl
from jax.experimental.pallas import tpu as pltpu

# ----------------------- configuration (small shapes) -----------------------
QUERY_MAX_LEN = 8            # args.query_max_len
SPECIAL_TOKEN_COUNT = 3      # args.special_token_count
MAX_LEN = 27                 # args.max_len
DOC_MAX_LEN = MAX_LEN - QUERY_MAX_LEN - SPECIAL_TOKEN_COUNT   # 16
HIDDEN = 32                  # PLM hidden size (stand-in)
KERNEL_COUNT = 100
KH, KW = 3, 3
DPOOL_H, DPOOL_W = 3, 10
OUT_DIM = DPOOL_H * DPOOL_W * KERNEL_COUNT                    # 3000
VOCAB = 64
BATCH = 2

LQ, LD = QUERY_MAX_LEN, DOC_MAX_LEN                           # 8, 16
CROWS = KERNEL_COUNT * LQ                                     # 800 conv rows
KCOLS = KW * LQ + 8                                           # 32 (24 taps + bias + pad)


# ----------------------------- helpers (glue) --------------------------------
def _ceil_to(x, m):
    return ((x + m - 1) // m) * m


def _adaptive_pool_matrix(in_size, out_size):
    """Row-stochastic matrix reproducing torch.nn.AdaptiveAvgPool2d bins."""
    m = np.zeros((out_size, in_size), np.float32)
    for i in range(out_size):
        s = (i * in_size) // out_size
        e = -((-(i + 1) * in_size) // out_size)   # ceil
        m[i, s:e] = 1.0 / (e - s)
    return m


def fake_plm(token_ids, token_mask, embed_table):
    # TODO(synk): stand-in for the pretrained PLM forward (embedding lookup).
    emb = embed_table[token_ids]                              # [B, MAX_LEN, H]
    return emb * token_mask[..., None].astype(emb.dtype)


# ------------------------------- Pallas kernel -------------------------------
def _make_kernel(bblk):
    X = bblk * LD   # lane width of all per-step tensors

    def kernel(qf_ref, dt_ref, w2_ref, m2t_ref, blkmask_ref, kwmask_ref,
               sel_ref, o_ref, mrow_ref, rhs_ref):
        # ---- 1) all-pairs match matmul + block-diag mask + fold -> [LQ, X]
        # full[b'*8+i, b*16+j] = <q[b',i,:], d[b,j,:]>  (one lane-dense MXU call)
        full = jnp.dot(qf_ref[...], dt_ref[...],
                       preferred_element_type=jnp.float32)     # [bblk*LQ, X] f32
        masked = full * blkmask_ref[...]                        # keep b'==b only
        match2 = masked[0:LQ, :]
        for b in range(1, bblk):                                # fold 8-row groups
            match2 = match2 + masked[b * LQ:(b + 1) * LQ, :]
        # stage with zeroed lane slack so the kw-shifted reads never see garbage
        mrow_ref[:, X:] = jnp.zeros((LQ, 128), jnp.float32)
        mrow_ref[:, :X] = match2

        # ---- 2) im2col along lanes: 3 shifted+masked taps, bias row, zero pad
        taps = [mrow_ref[:, kw:kw + X] * kwmask_ref[kw:kw + 1, :]
                for kw in range(KW)]                            # each [LQ, X] f32
        ones_row = kwmask_ref[0:1, :]                           # all-ones (bias)
        zeros7 = jnp.zeros((7, X), jnp.float32)
        rhs_ref[0:16, :] = jnp.concatenate(
            [taps[0], taps[1]], axis=0).astype(jnp.bfloat16)
        rhs_ref[16:32, :] = jnp.concatenate(
            [taps[2], ones_row, zeros7], axis=0).astype(jnp.bfloat16)

        # ---- 3) conv(3x3) + bias as ONE MXU matmul, ReLU
        # conv[c*8+i, b*16+j] = Conv2d output at (c, i, j) for batch element b.
        conv = jnp.dot(w2_ref[...], rhs_ref[...],
                       preferred_element_type=jnp.float32)      # [800, X] f32
        act = jnp.maximum(conv, 0.0)

        # ---- 4) fused AdaptiveAvgPool2d + Linear tail (MXU, f32)
        # t[j', lane] = sum_r M2[r, j'] * act[r, lane]; keep the j'==lane%16
        # diagonal and sum over sublanes -> per-(b, j) partial score.
        t = jnp.dot(m2t_ref[...], act,
                    preferred_element_type=jnp.float32)         # [16, X] f32
        o_ref[...] = jnp.sum(t * sel_ref[...], axis=0, keepdims=True)  # [1, X]

    return kernel


# --------------------------------- wrapper -----------------------------------
def plm_matchpyramid_scores(query_embed, doc_embed, conv_w, conv_b,
                            out_w, out_b, *, bblk=None):
    B = query_embed.shape[0]
    # bblk: multiple of 8 (lane-dense 128-lane multiples), capped at 32 so large
    # batches produce >=2 grid blocks (v7x megacore) with moderate VMEM use.
    if bblk is None:
        bblk = min(32, _ceil_to(B, 8))
    bblk = max(8, _ceil_to(bblk, 8))
    b_pad = _ceil_to(B, bblk)
    n_blocks = b_pad // bblk
    X = bblk * LD

    q = query_embed.astype(jnp.bfloat16)
    d = doc_embed.astype(jnp.bfloat16)
    if b_pad != B:
        q = jnp.pad(q, ((0, b_pad - B), (0, 0), (0, 0)))
        d = jnp.pad(d, ((0, b_pad - B), (0, 0), (0, 0)))

    # Qf[b*8+i, h] = q[b, i, h]   (pure reshape, no transpose)
    qf = q.reshape(b_pad * LQ, HIDDEN)
    # Dt[g*H+h, b_local*16+j] = d[g*bblk+b_local, j, h]  (host layout plumbing)
    dt = d.reshape(n_blocks, bblk, LD, HIDDEN).transpose(0, 3, 1, 2)
    dt = dt.reshape(n_blocks * HIDDEN, X)

    # W2[c*8+i, kw*8+i'] = conv_w[c,0,i'-i,kw]; col 24 = conv bias; cols 25..31 = 0.
    conv_w_np = np.asarray(conv_w, np.float32).reshape(KERNEL_COUNT, KH, KW)
    conv_b_np = np.asarray(conv_b, np.float32)
    w2 = np.zeros((CROWS, KCOLS), np.float32)
    for kh in range(KH):
        for kw in range(KW):
            for i in range(LQ - kh):
                rows = np.arange(KERNEL_COUNT) * LQ + i
                w2[rows, kw * LQ + i + kh] = conv_w_np[:, kh, kw]
    w2[:, KW * LQ] = np.repeat(conv_b_np, LQ)
    w2b = jnp.asarray(w2, jnp.bfloat16)

    # Fold pool + output projection (exact, ReLU is upstream):
    # M[c, i*16+j] = sum_{hb,wb} out_w[c*30+hb*10+wb] * ph[hb,i] * pw[wb,j]
    ph = _adaptive_pool_matrix(LQ, DPOOL_H)                    # [3, 8]
    pw = _adaptive_pool_matrix(LD, DPOOL_W)                    # [10, 16]
    wo = np.asarray(out_w, np.float32).reshape(KERNEL_COUNT, DPOOL_H * DPOOL_W)
    m = wo @ np.kron(ph, pw)                                   # [100, 128]
    m2t = jnp.asarray(m.reshape(CROWS, LD).T, jnp.float32)     # [16, 800]

    # Grid-invariant masks (host precomputed; constant blocks are DMA'd once).
    lane = np.arange(X)
    blkmask = (np.arange(bblk * LQ)[:, None] // LQ
               == lane[None, :] // LD).astype(np.float32)      # [bblk*8, X]
    kwmask = np.stack([(lane % LD) < (LD - kw)
                       for kw in range(KW)]).astype(np.float32)  # [3, X]
    sel = (np.arange(LD)[:, None] == (lane[None, :] % LD)
           ).astype(np.float32)                                 # [16, X]

    out = pl.pallas_call(
        _make_kernel(bblk),
        out_shape=jax.ShapeDtypeStruct((1, n_blocks * X), jnp.float32),
        grid_spec=pltpu.PrefetchScalarGridSpec(
            num_scalar_prefetch=0,
            grid=(n_blocks,),
            in_specs=[
                pl.BlockSpec((bblk * LQ, HIDDEN), lambda g: (g, 0)),   # qf
                pl.BlockSpec((HIDDEN, X), lambda g: (g, 0)),           # dt
                pl.BlockSpec((CROWS, KCOLS), lambda g: (0, 0)),        # w2b
                pl.BlockSpec((LD, CROWS), lambda g: (0, 0)),           # m2t
                pl.BlockSpec((bblk * LQ, X), lambda g: (0, 0)),        # blkmask
                pl.BlockSpec((KW, X), lambda g: (0, 0)),               # kwmask
                pl.BlockSpec((LD, X), lambda g: (0, 0)),               # sel
            ],
            out_specs=pl.BlockSpec((1, X), lambda g: (0, g)),
            scratch_shapes=[
                pltpu.VMEM((LQ, X + 128), jnp.float32),     # match rows + slack
                pltpu.VMEM((KCOLS, X), jnp.bfloat16),       # staged conv RHS
            ],
        ),
        compiler_params=pltpu.CompilerParams(
            dimension_semantics=("parallel",)),
    )(qf, dt, w2b, m2t, jnp.asarray(blkmask), jnp.asarray(kwmask),
      jnp.asarray(sel))

    # Final 16-way add per score + output bias (trivial, done in XLA).
    scores = out.reshape(b_pad, LD).sum(axis=1) + jnp.asarray(out_b,
                                                              jnp.float32)[0]
    return scores[:B].reshape(B, 1)


# ------------------------------ numpy reference -------------------------------
def _reference_numpy(q, d, conv_w, conv_b, out_w, out_b):
    B = q.shape[0]
    match = np.einsum('bqh,bdh->bqd', q, d).astype(np.float32)        # [B,LQ,LD]
    padded = np.zeros((B, LQ + KH - 1, LD + KW - 1), np.float32)
    padded[:, :LQ, :LD] = match
    conv = np.zeros((B, KERNEL_COUNT, LQ, LD), np.float32)
    for kh in range(KH):
        for kw in range(KW):
            w = conv_w[:, 0, kh, kw][None, :, None, None]             # [1,C,1,1]
            conv += w * padded[:, None, kh:kh + LQ, kw:kw + LD]
    conv = np.maximum(conv + conv_b[None, :, None, None], 0.0)
    ph = _adaptive_pool_matrix(LQ, DPOOL_H)
    pw = _adaptive_pool_matrix(LD, DPOOL_W)
    pooled = np.einsum('hi,bcij,wj->bchw', ph, conv, pw)              # [B,C,3,10]
    flat = pooled.reshape(B, -1)
    return flat @ out_w.T + out_b[None, :]


# ----------------------------------- main -------------------------------------
if __name__ == "__main__":
    key = jax.random.PRNGKey(0)
    k1, k2, k3, k4, k5, k6 = jax.random.split(key, 6)

    # model inputs
    token_ids = jax.random.randint(k1, (BATCH, MAX_LEN), 0, VOCAB)
    segment_ids = jnp.concatenate(
        [jnp.zeros((BATCH, QUERY_MAX_LEN + 2), jnp.int32),
         jnp.ones((BATCH, MAX_LEN - QUERY_MAX_LEN - 2), jnp.int32)], axis=1)
    token_mask = jnp.ones((BATCH, MAX_LEN), jnp.int32)
    query_lens = jnp.full((BATCH,), QUERY_MAX_LEN, jnp.int32)
    doc_lens = jnp.full((BATCH,), DOC_MAX_LEN, jnp.int32)

    # deterministic parameters
    embed_table = jax.random.normal(k2, (VOCAB, HIDDEN), jnp.float32) * 0.5
    conv_w = jax.random.normal(k3, (KERNEL_COUNT, 1, KH, KW), jnp.float32) * 0.1
    conv_b = jax.random.normal(k4, (KERNEL_COUNT,), jnp.float32) * 0.01
    out_w = jax.random.normal(k5, (1, OUT_DIM), jnp.float32) * 0.05
    out_b = jax.random.normal(k6, (1,), jnp.float32) * 0.01

    # "PLM" contextualized embeddings + the exact slicing from forward()
    contextualized = fake_plm(token_ids, token_mask, embed_table)
    query_embed = contextualized[:, 1:QUERY_MAX_LEN + 1]              # [B,LQ,H]
    doc_start = QUERY_MAX_LEN + 2
    doc_embed = contextualized[:, doc_start:doc_start + DOC_MAX_LEN]  # [B,LD,H]

    scores = plm_matchpyramid_scores(query_embed, doc_embed,
                                     conv_w, conv_b, out_w, out_b)
    scores = jax.block_until_ready(scores)

    # Reference on the same bf16-rounded embeddings the kernel consumes.
    # (Deliberate precision tradeoff: the kernel feeds the match/conv matmuls
    #  bf16 operands with f32 accumulation; the reference keeps f32 weights.)
    q_np = np.asarray(query_embed.astype(jnp.bfloat16).astype(jnp.float32))
    d_np = np.asarray(doc_embed.astype(jnp.bfloat16).astype(jnp.float32))
    ref = _reference_numpy(q_np, d_np,
                           np.asarray(conv_w), np.asarray(conv_b),
                           np.asarray(out_w), np.asarray(out_b))
    np.testing.assert_allclose(np.asarray(scores), ref, rtol=1e-2, atol=3e-2)
    print("KERNEL_OK")
</pallas_src>

<mosaic_0001>
module attributes {stable_mosaic.version = 11 : i64} {
  func.func @kernel(%arg0: i32, %arg1: memref<64x32xbf16, #tpu.memory_space<vmem>>, %arg2: memref<32x128xbf16, #tpu.memory_space<vmem>>, %arg3: memref<800x32xbf16, #tpu.memory_space<vmem>>, %arg4: memref<16x800xf32, #tpu.memory_space<vmem>>, %arg5: memref<64x128xf32, #tpu.memory_space<vmem>>, %arg6: memref<3x128xf32, #tpu.memory_space<vmem>>, %arg7: memref<16x128xf32, #tpu.memory_space<vmem>>, %arg8: memref<1x128xf32, #tpu.memory_space<vmem>>, %arg9: memref<8x256xf32, #tpu.memory_space<vmem>>, %arg10: memref<32x128xbf16, #tpu.memory_space<vmem>>) attributes {dimension_semantics = [#tpu.dimension_semantics<parallel>], iteration_bounds = array<i64: 1>, scalar_prefetch = 0 : i64, scratch_operands = 2 : i64, tpu.core_type = #tpu.core_type<tc>, window_params = [{transform_indices = @transform_0, window_bounds = array<i64: 64, 32>}, {transform_indices = @transform_1, window_bounds = array<i64: 32, 128>}, {pipeline_mode = #tpu.pipeline_mode<synchronous>, transform_indices = @transform_2, window_bounds = array<i64: 800, 32>}, {pipeline_mode = #tpu.pipeline_mode<synchronous>, transform_indices = @transform_3, window_bounds = array<i64: 16, 800>}, {pipeline_mode = #tpu.pipeline_mode<synchronous>, transform_indices = @transform_4, window_bounds = array<i64: 64, 128>}, {pipeline_mode = #tpu.pipeline_mode<synchronous>, transform_indices = @transform_5, window_bounds = array<i64: 3, 128>}, {pipeline_mode = #tpu.pipeline_mode<synchronous>, transform_indices = @transform_6, window_bounds = array<i64: 16, 128>}, {transform_indices = @transform_7, window_bounds = array<i64: 1, 128>}]} {
    %c0 = arith.constant 0 : index
    %c0_0 = arith.constant 0 : index
    %0 = vector.load %arg1[%c0, %c0_0] : memref<64x32xbf16, #tpu.memory_space<vmem>>, vector<64x32xbf16>
    %c0_1 = arith.constant 0 : index
    %c0_2 = arith.constant 0 : index
    %1 = vector.load %arg2[%c0_1, %c0_2] : memref<32x128xbf16, #tpu.memory_space<vmem>>, vector<32x128xbf16>
    %cst = arith.constant dense<0.000000e+00> : vector<64x128xf32>
    %2 = tpu.matmul %0, %1, %cst {dimension_numbers = #tpu.dot_dimension_numbers<[1], [0], [0], [1], [0, 0, 1, 1], [], []>} : vector<64x32xbf16>, vector<32x128xbf16>, vector<64x128xf32> -> vector<64x128xf32>
    %c0_3 = arith.constant 0 : index
    %c0_4 = arith.constant 0 : index
    %3 = vector.load %arg5[%c0_3, %c0_4] : memref<64x128xf32, #tpu.memory_space<vmem>>, vector<64x128xf32>
    %4 = arith.mulf %2, %3 : vector<64x128xf32>
    %5 = vector.extract_strided_slice %4 {offsets = [0, 0], sizes = [8, 128], strides = [1, 1]} : vector<64x128xf32> to vector<8x128xf32>
    %6 = vector.extract_strided_slice %4 {offsets = [8, 0], sizes = [8, 128], strides = [1, 1]} : vector<64x128xf32> to vector<8x128xf32>
    %7 = arith.addf %5, %6 : vector<8x128xf32>
    %8 = vector.extract_strided_slice %4 {offsets = [16, 0], sizes = [8, 128], strides = [1, 1]} : vector<64x128xf32> to vector<8x128xf32>
    %9 = arith.addf %7, %8 : vector<8x128xf32>
    %10 = vector.extract_strided_slice %4 {offsets = [24, 0], sizes = [8, 128], strides = [1, 1]} : vector<64x128xf32> to vector<8x128xf32>
    %11 = arith.addf %9, %10 : vector<8x128xf32>
    %12 = vector.extract_strided_slice %4 {offsets = [32, 0], sizes = [8, 128], strides = [1, 1]} : vector<64x128xf32> to vector<8x128xf32>
    %13 = arith.addf %11, %12 : vector<8x128xf32>
    %14 = vector.extract_strided_slice %4 {offsets = [40, 0], sizes = [8, 128], strides = [1, 1]} : vector<64x128xf32> to vector<8x128xf32>
    %15 = arith.addf %13, %14 : vector<8x128xf32>
    %16 = vector.extract_strided_slice %4 {offsets = [48, 0], sizes = [8, 128], strides = [1, 1]} : vector<64x128xf32> to vector<8x128xf32>
    %17 = arith.addf %15, %16 : vector<8x128xf32>
    %18 = vector.extract_strided_slice %4 {offsets = [56, 0], sizes = [8, 128], strides = [1, 1]} : vector<64x128xf32> to vector<8x128xf32>
    %19 = arith.addf %17, %18 : vector<8x128xf32>
    %cst_5 = arith.constant 0.000000e+00 : f32
    %20 = vector.broadcast %cst_5 : f32 to vector<8x128xf32>
    %c0_6 = arith.constant 0 : index
    %c128 = arith.constant 128 : index
    %21 = vector.load %arg9[%c0_6, %c128] : memref<8x256xf32, #tpu.memory_space<vmem>>, vector<8x128xf32>
    tpu.vector_store %arg9[%c0_6, %c128], %20 {strides = array<i32>} : memref<8x256xf32, #tpu.memory_space<vmem>>, vector<8x128xf32>,
    %c0_7 = arith.constant 0 : index
    %c0_8 = arith.constant 0 : index
    %22 = vector.load %arg9[%c0_7, %c0_8] : memref<8x256xf32, #tpu.memory_space<vmem>>, vector<8x128xf32>
    tpu.vector_store %arg9[%c0_7, %c0_8], %19 {strides = array<i32>} : memref<8x256xf32, #tpu.memory_space<vmem>>, vector<8x128xf32>,
    %c0_9 = arith.constant 0 : index
    %c0_10 = arith.constant 0 : index
    %23 = vector.load %arg9[%c0_9, %c0_10] : memref<8x256xf32, #tpu.memory_space<vmem>>, vector<8x128xf32>
    %c0_11 = arith.constant 0 : index
    %c0_12 = arith.constant 0 : index
    %24 = vector.load %arg6[%c0_11, %c0_12] : memref<3x128xf32, #tpu.memory_space<vmem>>, vector<1x128xf32>
    %25 = vector.broadcast %24 : vector<1x128xf32> to vector<8x128xf32>
    %26 = arith.mulf %23, %25 : vector<8x128xf32>
    %c0_13 = arith.constant 0 : index
    %c1 = arith.constant 1 : index
    %27 = vector.load %arg9[%c0_13, %c1] : memref<8x256xf32, #tpu.memory_space<vmem>>, vector<8x128xf32>
    %c1_14 = arith.constant 1 : index
    %c0_15 = arith.constant 0 : index
    %28 = vector.load %arg6[%c1_14, %c0_15] : memref<3x128xf32, #tpu.memory_space<vmem>>, vector<1x128xf32>
    %29 = vector.broadcast %28 : vector<1x128xf32> to vector<8x128xf32>
    %30 = arith.mulf %27, %29 : vector<8x128xf32>
    %c0_16 = arith.constant 0 : index
    %c2 = arith.constant 2 : index
    %31 = vector.load %arg9[%c0_16, %c2] : memref<8x256xf32, #tpu.memory_space<vmem>>, vector<8x128xf32>
    %c2_17 = arith.constant 2 : index
    %c0_18 = arith.constant 0 : index
    %32 = vector.load %arg6[%c2_17, %c0_18] : memref<3x128xf32, #tpu.memory_space<vmem>>, vector<1x128xf32>
    %33 = vector.broadcast %32 : vector<1x128xf32> to vector<8x128xf32>
    %34 = arith.mulf %31, %33 : vector<8x128xf32>
    %c0_19 = arith.constant 0 : index
    %c0_20 = arith.constant 0 : index
    %35 = vector.load %arg6[%c0_19, %c0_20] : memref<3x128xf32, #tpu.memory_space<vmem>>, vector<1x128xf32>
    %cst_21 = arith.constant 0.000000e+00 : f32
    %36 = vector.broadcast %cst_21 : f32 to vector<7x128xf32>
    %37 = tpu.concatenate %26, %30 in 0 : vector<8x128xf32>, vector<8x128xf32> -> vector<16x128xf32>
    %38 = arith.truncf %37 : vector<16x128xf32> to vector<16x128xbf16>
    %c0_22 = arith.constant 0 : index
    %c0_23 = arith.constant 0 : index
    %39 = vector.load %arg10[%c0_22, %c0_23] : memref<32x128xbf16, #tpu.memory_space<vmem>>, vector<16x128xbf16>
    tpu.vector_store %arg10[%c0_22, %c0_23], %38 {strides = array<i32>} : memref<32x128xbf16, #tpu.memory_space<vmem>>, vector<16x128xbf16>,
    %40 = tpu.concatenate %34, %35, %36 in 0 : vector<8x128xf32>, vector<1x128xf32>, vector<7x128xf32> -> vector<16x128xf32>
    %41 = arith.truncf %40 : vector<16x128xf32> to vector<16x128xbf16>
    %c16 = arith.constant 16 : index
    %c0_24 = arith.constant 0 : index
    %42 = vector.load %arg10[%c16, %c0_24] : memref<32x128xbf16, #tpu.memory_space<vmem>>, vector<16x128xbf16>
    tpu.vector_store %arg10[%c16, %c0_24], %41 {strides = array<i32>} : memref<32x128xbf16, #tpu.memory_space<vmem>>, vector<16x128xbf16>,
    %c0_25 = arith.constant 0 : index
    %c0_26 = arith.constant 0 : index
    %43 = vector.load %arg3[%c0_25, %c0_26] : memref<800x32xbf16, #tpu.memory_space<vmem>>, vector<800x32xbf16>
    %c0_27 = arith.constant 0 : index
    %c0_28 = arith.constant 0 : index
    %44 = vector.load %arg10[%c0_27, %c0_28] : memref<32x128xbf16, #tpu.memory_space<vmem>>, vector<32x128xbf16>
    %cst_29 = arith.constant dense<0.000000e+00> : vector<800x128xf32>
    %45 = tpu.matmul %43, %44, %cst_29 {dimension_numbers = #tpu.dot_dimension_numbers<[1], [0], [0], [1], [0, 0, 1, 1], [], []>} : vector<800x32xbf16>, vector<32x128xbf16>, vector<800x128xf32> -> vector<800x128xf32>
    %cst_30 = arith.constant 0.000000e+00 : f32
    %46 = vector.broadcast %cst_30 : f32 to vector<800x128xf32>
    %47 = arith.maximumf %45, %46 : vector<800x128xf32>
    %c0_31 = arith.constant 0 : index
    %c0_32 = arith.constant 0 : index
    %48 = vector.load %arg4[%c0_31, %c0_32] : memref<16x800xf32, #tpu.memory_space<vmem>>, vector<16x800xf32>
    %cst_33 = arith.constant dense<0.000000e+00> : vector<16x128xf32>
    %49 = tpu.matmul %48, %47, %cst_33 {dimension_numbers = #tpu.dot_dimension_numbers<[1], [0], [0], [1], [0, 0, 1, 1], [], []>} : vector<16x800xf32>, vector<800x128xf32>, vector<16x128xf32> -> vector<16x128xf32>
    %c0_34 = arith.constant 0 : index
    %c0_35 = arith.constant 0 : index
    %50 = vector.load %arg7[%c0_34, %c0_35] : memref<16x128xf32, #tpu.memory_space<vmem>>, vector<16x128xf32>
    %51 = arith.mulf %49, %50 : vector<16x128xf32>
    %cst_36 = arith.constant dense<0.000000e+00> : vector<128xf32>
    %52 = vector.multi_reduction <add>, %51, %cst_36 [0] : vector<16x128xf32> to vector<128xf32>
    %53 = vector.shape_cast %52 : vector<128xf32> to vector<1x128xf32>
    %c0_37 = arith.constant 0 : index
    %c0_38 = arith.constant 0 : index
    %54 = vector.load %arg8[%c0_37, %c0_38] : memref<1x128xf32, #tpu.memory_space<vmem>>, vector<1x128xf32>
    tpu.vector_store %arg8[%c0_37, %c0_38], %53 {strides = array<i32>} : memref<1x128xf32, #tpu.memory_space<vmem>>, vector<1x128xf32>,
    return
  }
  func.func @transform_0(%arg0: i32) -> (i32, i32) {
    %c0_i32 = arith.constant 0 : i32
    %c0_i32_0 = arith.constant 0 : i32
    return %arg0, %c0_i32 : i32, i32
  }
  func.func @transform_1(%arg0: i32) -> (i32, i32) {
    %c0_i32 = arith.constant 0 : i32
    %c0_i32_0 = arith.constant 0 : i32
    return %arg0, %c0_i32 : i32, i32
  }
  func.func @transform_2(%arg0: i32) -> (i32, i32) {
    %c0_i32 = arith.constant 0 : i32
    %c0_i32_0 = arith.constant 0 : i32
    %c0_i32_1 = arith.constant 0 : i32
    return %c0_i32, %c0_i32_0 : i32, i32
  }
  func.func @transform_3(%arg0: i32) -> (i32, i32) {
    %c0_i32 = arith.constant 0 : i32
    %c0_i32_0 = arith.constant 0 : i32
    %c0_i32_1 = arith.constant 0 : i32
    return %c0_i32, %c0_i32_0 : i32, i32
  }
  func.func @transform_4(%arg0: i32) -> (i32, i32) {
    %c0_i32 = arith.constant 0 : i32
    %c0_i32_0 = arith.constant 0 : i32
    %c0_i32_1 = arith.constant 0 : i32
    return %c0_i32, %c0_i32_0 : i32, i32
  }
  func.func @transform_5(%arg0: i32) -> (i32, i32) {
    %c0_i32 = arith.constant 0 : i32
    %c0_i32_0 = arith.constant 0 : i32
    %c0_i32_1 = arith.constant 0 : i32
    return %c0_i32, %c0_i32_0 : i32, i32
  }
  func.func @transform_6(%arg0: i32) -> (i32, i32) {
    %c0_i32 = arith.constant 0 : i32
    %c0_i32_0 = arith.constant 0 : i32
    %c0_i32_1 = arith.constant 0 : i32
    return %c0_i32, %c0_i32_0 : i32, i32
  }
  func.func @transform_7(%arg0: i32) -> (i32, i32) {
    %c0_i32 = arith.constant 0 : i32
    %c0_i32_0 = arith.constant 0 : i32
    return %c0_i32, %arg0 : i32, i32
  }
}

</mosaic_0001>

<llo_original>
// kernel: tpu_custom_call.1
$region0: #{tpu_custom_call.1}
  #allocation0 [shape = 'u32[]', space=smem, size = 0x4, offset = 0x4, fixed_abs, tag = 'smem constant byte address 0x4 - core index']
  #allocation1 [shape = 'u32[144,128]{1,0:T(1,128)}', space=vmem, size = 0x12000, scoped, tag = 'internal scratch']
  #allocation2 [shape = 'f32[8,256]{1,0:T(8,128)}', space=vmem, size = 0x2000, scoped, tag = 'scratch operand']
  #allocation3 [shape = 'bf16[32,128]{1,0:T(16,128)(2,1)}', space=vmem, size = 0x2000, scoped, tag = 'scratch operand']
  %s0 = inlined_call_operand.vmem [shape: bf16[64,32], index: 0, kind: input, shape index: {}]
  %s1 = inlined_call_operand.vmem [shape: bf16[32,128], index: 1, kind: input, shape index: {}]
  %s2 = inlined_call_operand.vmem [shape: bf16[800,32], index: 2, kind: input, shape index: {}]
  %s3 = inlined_call_operand.vmem [shape: f32[16,800], index: 3, kind: input, shape index: {}]
  %s4 = inlined_call_operand.vmem [shape: f32[64,128], index: 4, kind: input, shape index: {}]
  %s5 = inlined_call_operand.vmem [shape: f32[3,128], index: 5, kind: input, shape index: {}]
  %s6 = inlined_call_operand.vmem [shape: f32[16,128], index: 6, kind: input, shape index: {}]
  %s7 = inlined_call_operand.hbm [shape: f32[1,128], index: 7, kind: output, shape index: {}]
  %s8 = sld [smem:[#allocation0]]
  $region38: #{tpu_custom_call.1} parent=0
    _
  %s10 = ssub.s32 1, %s8
  %s11 = scalar_select 0, %s10, %s8
  $region1: #{tpu_custom_call.1} parent=0
    #allocation4 [shape = 'u8[512]{0}', space=vmem, size = 0x400, scoped, tag = 'output window, operand 0, single buffered']
    #allocation5 [shape = 's32[1]{0}', space=sflag, size = 0x4, scoped, tag = 'scoped memory for tpu_custom_call.1']
    %12 = vsyncpa [#allocation5], 0
    // Predicated region
    $region2: #{tpu_custom_call.1} parent=1 // pred_check
      _
    $region3: #{tpu_custom_call.1} parent=1 // pred_check_branch
      %14 = sbr.rel (0) target = $region5
    $region4: #{tpu_custom_call.1} parent=1 // pred_region
      _
    $region5: #{tpu_custom_call.1} parent=1 // pred_fallthru
      _
    // Predicated region
    $region6: #{tpu_custom_call.1} parent=1 // pred_check
      _
    $region7: #{tpu_custom_call.1} parent=1 // pred_check_branch
      %16 = sbr.rel (0) target = $region9
    $region8: #{tpu_custom_call.1} parent=1 // pred_region
      _
    $region9: #{tpu_custom_call.1} parent=1 // pred_fallthru
      _
    // Predicated region
    $region10: #{tpu_custom_call.1} parent=1 // pred_check
      _
    $region11: #{tpu_custom_call.1} parent=1 // pred_check_branch
      %18 = sbr.rel (0) target = $region13
    $region12: #{tpu_custom_call.1} parent=1 // pred_region
      _
    $region13: #{tpu_custom_call.1} parent=1 // pred_fallthru
      _
    // Predicated region
    $region14: #{tpu_custom_call.1} parent=1 // pred_check
      _
    $region15: #{tpu_custom_call.1} parent=1 // pred_check_branch
      %20 = sbr.rel (0) target = $region17
    $region16: #{tpu_custom_call.1} parent=1 // pred_region
      _
    $region17: #{tpu_custom_call.1} parent=1 // pred_fallthru
      _
    // Predicated region
    $region18: #{tpu_custom_call.1} parent=1 // pred_check
      _
    $region19: #{tpu_custom_call.1} parent=1 // pred_check_branch
      %22 = sbr.rel (0) target = $region21
    $region20: #{tpu_custom_call.1} parent=1 // pred_region
      _
    $region21: #{tpu_custom_call.1} parent=1 // pred_fallthru
      _
    // Predicated region
    $region22: #{tpu_custom_call.1} parent=1 // pred_check
      _
    $region23: #{tpu_custom_call.1} parent=1 // pred_check_branch
      %24 = sbr.rel (0) target = $region25
    $region24: #{tpu_custom_call.1} parent=1 // pred_region
      _
    $region25: #{tpu_custom_call.1} parent=1 // pred_fallthru
      _
    // Predicated region
    $region26: #{tpu_custom_call.1} parent=1 // pred_check
      _
    $region27: #{tpu_custom_call.1} parent=1 // pred_check_branch
      %26 = sbr.rel (0) target = $region29
    $region28: #{tpu_custom_call.1} parent=1 // pred_region
      _
    $region29: #{tpu_custom_call.1} parent=1 // pred_fallthru
      _
    %v28 = vld [vmem:[%s0] sm:$0xf]
    %v29 = vld [vmem:[%s0 + $0x4] sm:$0xf]
    %v30 = vld [vmem:[%s0 + $0x8] sm:$0xf]
    %v31 = vld [vmem:[%s0 + $0xc] sm:$0xf]
    %v32 = vld [vmem:[%s0 + $0x10] sm:$0xf]
    %v33 = vld [vmem:[%s0 + $0x14] sm:$0xf]
    %v34 = vld [vmem:[%s0 + $0x18] sm:$0xf]
    %v35 = vld [vmem:[%s0 + $0x1c] sm:$0xf]
    %v36 = vld [vmem:[%s1] sm:$0xf]
    %v37 = vld [vmem:[%s1 + $0x4] sm:$0xf]
    %v38 = vld [vmem:[%s1 + $0x8] sm:$0xf]
    %v39 = vld [vmem:[%s1 + $0xc] sm:$0xf]
    %v48 = vunpack.c.l.b16 %v28
    %v49 = vunpack.c.l.b16 %v29
    %v50 = vunpack.c.l.b16 %v30
    %v51 = vunpack.c.l.b16 %v31
    %v52 = vunpack.c.l.b16 %v32
    %v53 = vunpack.c.l.b16 %v33
    %v54 = vunpack.c.l.b16 %v34
    %v55 = vunpack.c.l.b16 %v35
    %v56 = vpack.c.b16 %v49, %v48
    %v57 = vpack.c.b16 %v51, %v50
    %v58 = vpack.c.b16 %v53, %v52
    %v59 = vpack.c.b16 %v55, %v54
    %v64 = vunpack.c.l.b16 %v36
    %v65 = vunpack.c.l.b16 %v37
    %v66 = vunpack.c.l.b16 %v38
    %v67 = vunpack.c.l.b16 %v39
    %v68 = vpack.c.b16 %v65, %v64
    %v69 = vpack.c.b16 %v67, %v66
    %vm72 = vcmask 261120
    %v74 = vsel %vm72, %v56, 0
    %v77 = vsel %vm72, %v57, 0
    %v80 = vsel %vm72, %v58, 0
    %v83 = vsel %vm72, %v59, 0
    %85 = vmatprep.subr.bf16.mxu0 0
    %86 = vmatpush1.bf16.msra.mxu0 %v68
    %87 = vmatprep.subr.bf16.mxu0 0
    %88 = vmatpush1.bf16.msra.mxu0 %v69
    %89 = vmatprep.subr.bf16.mxu0 0
    %90 = vmatpush1.bf16.msra.mxu0 0
    %91 = vmatprep.subr.bf16.mxu0 0
    %92 = vmatpush1.bf16.msra.mxu0 0
    %93 = vmatprep.subr.bf16.mxu0 0
    %94 = vmatpush1.bf16.msra.mxu0 0
    %95 = vmatprep.subr.bf16.mxu0 0
    %96 = vmatpush1.bf16.msra.mxu0 0
    %97 = vmatprep.subr.bf16.mxu0 0
    %98 = vmatpush1.bf16.msra.mxu0 0
    %99 = vmatprep.subr.bf16.mxu0 0
    %100 = vmatpush1.bf16.msra.mxu0 0
    %101 = vmatprep.subr.bf16.mxu0 0
    %102 = vmatpush1.bf16.msra.mxu0 0
    %103 = vmatprep.subr.bf16.mxu0 0
    %104 = vmatpush1.bf16.msra.mxu0 0
    %105 = vmatprep.subr.bf16.mxu0 0
    %106 = vmatpush1.bf16.msra.mxu0 0
    %107 = vmatprep.subr.bf16.mxu0 0
    %108 = vmatpush1.bf16.msra.mxu0 0
    %109 = vmatprep.subr.bf16.mxu0 0
    %110 = vmatpush1.bf16.msra.mxu0 0
    %111 = vmatprep.subr.bf16.mxu0 0
    %112 = vmatpush1.bf16.msra.mxu0 0
    %113 = vmatprep.subr.bf16.mxu0 0
    %114 = vmatpush1.bf16.msra.mxu0 0
    %115 = vmatprep.subr.bf16.mxu0 0
    %116 = vmatpush1.bf16.msra.mxu0 0
    %117 = vmatprep.mubr.bf16.mxu0 0
    %118 = vmatmul.mubr.bf16.gmra.mrb[0].mxu0 %v74
    %v119 = vpop.f32.mrb[0].mxu0
    %v120 = vadd.f32 0.0, %v119
    %v121 = vpop.f32.mrb[0].mxu0
    %v122 = vpop.f32.mrb[0].mxu0
    %v123 = vadd.f32 0.0, %v122
    %v124 = vpop.f32.mrb[0].mxu0
    %125 = vmatprep.mubr.bf16.mxu0 0
    %126 = vmatmul.mubr.bf16.gmra.mrb[0].mxu0 %v77
    %v127 = vpop.f32.mrb[0].mxu0
    %v128 = vadd.f32 0.0, %v127
    %v129 = vpop.f32.mrb[0].mxu0
    %v130 = vpop.f32.mrb[0].mxu0
    %v131 = vadd.f32 0.0, %v130
    %v132 = vpop.f32.mrb[0].mxu0
    %133 = vmatprep.mubr.bf16.mxu0 0
    %134 = vmatmul.mubr.bf16.gmra.mrb[0].mxu0 %v80
    %v135 = vpop.f32.mrb[0].mxu0
    %v136 = vadd.f32 0.0, %v135
    %v137 = vpop.f32.mrb[0].mxu0
    %v138 = vpop.f32.mrb[0].mxu0
    %v139 = vadd.f32 0.0, %v138
    %v140 = vpop.f32.mrb[0].mxu0
    %141 = vmatprep.mubr.bf16.mxu0 0
    %142 = vmatmul.mubr.bf16.gmra.mrb[0].mxu0 %v83
    %v143 = vpop.f32.mrb[0].mxu0
    %v144 = vadd.f32 0.0, %v143
    %v145 = vpop.f32.mrb[0].mxu0
    %v146 = vpop.f32.mrb[0].mxu0
    %v147 = vadd.f32 0.0, %v146
    %v148 = vpop.f32.mrb[0].mxu0
    %149 = vdwg.mxu0
    %v150 = vld [vmem:[%s4] sm:$0xff]
    %v151 = vld [vmem:[%s4 + $0x8] sm:$0xff]
    %v152 = vld [vmem:[%s4 + $0x10] sm:$0xff]
    %v153 = vld [vmem:[%s4 + $0x18] sm:$0xff]
    %v154 = vld [vmem:[%s4 + $0x20] sm:$0xff]
    %v155 = vld [vmem:[%s4 + $0x28] sm:$0xff]
    %v156 = vld [vmem:[%s4 + $0x30] sm:$0xff]
    %v157 = vld [vmem:[%s4 + $0x38] sm:$0xff]
    %v158 = vmul.f32 %v120, %v150
    %v159 = vmul.f32 %v123, %v151
    %v160 = vmul.f32 %v128, %v152
    %v161 = vmul.f32 %v131, %v153
    %v162 = vmul.f32 %v136, %v154
    %v163 = vmul.f32 %v139, %v155
    %v164 = vmul.f32 %v144, %v156
    %v165 = vmul.f32 %v147, %v157
    %v166 = vadd.f32 %v158, %v159
    %v167 = vadd.f32 %v166, %v160
    %v168 = vadd.f32 %v167, %v161
    %v169 = vadd.f32 %v168, %v162
    %v170 = vadd.f32 %v169, %v163
    %v171 = vadd.f32 %v170, %v164
    %v172 = vadd.f32 %v171, %v165
    %173 = vst [vmem:[#allocation2 + $0x8] sm:$0xff] 0.0
    %174 = vst [vmem:[#allocation2] sm:$0xff] %v172
    %v175 = vld [vmem:[#allocation2] sm:$0xff]
    %v176 = vld [vmem:[%s5] sm:$0x1]
    %v177 = vlaneseq
    %v178 = vshrl.u32 %v177, 7
    %v179 = vsub.s32 0, %v178
    %v180 = vrot.slane %v176, %v179
    %v181 = vmul.f32 %v175, %v180
    %v182 = vld [vmem:[#allocation2] sm:$0xff]
    %v183 = vld [vmem:[#allocation2 + $0x8] sm:$0xff]
    %v184 = vld [vmem:[%s5 + $0x1] sm:$0x1]
    %v185 = vlaneseq
    %v186 = vshrl.u32 %v185, 7
    %v187 = vsub.s32 0, %v186
    %v188 = vrot.slane %v184, %v187
    %190 = vrot.lane.b32.xlu0 %v188, 1
    %v191 = vpop.permute.xlu0 %190
    %v193 = vmul.f32 %v182, %v191
    %v194 = vmul.f32 %v183, %v191
    %v195 = vld [vmem:[%s5 + $0x2] sm:$0x1]
    %v196 = vlaneseq
    %v197 = vshrl.u32 %v196, 7
    %v198 = vsub.s32 0, %v197
    %v199 = vrot.slane %v195, %v198
    %201 = vrot.lane.b32.xlu0 %v199, 2
    %v202 = vpop.permute.xlu0 %201
    %v204 = vmul.f32 %v182, %v202
    %v205 = vmul.f32 %v183, %v202
    %208 = vrot.lane.b32.xlu0 %v193, 127
    %v209 = vpop.permute.xlu0 %208
    %210 = vrot.lane.b32.xlu0 %v194, 127
    %v211 = vpop.permute.xlu0 %210
    %vm212 = vcmask 1039360
    %v213 = vsel %vm212, %v209, %v211
    %v215 = vpack.c.bf16 %v213, %v181
    %216 = vst [vmem:[#allocation3] sm:$0xff] %v215
    %218 = vrot.lane.b32.xlu0 %v176, 2
    %v219 = vpop.permute.xlu0 %218
    %vm221 = vcmask 1040384
    %v222 = vsel %vm221, %v219, 0.0
    %v223 = vpack.c.bf16 %v222, %v204
    %v224 = vpack.c.bf16 %v222, %v205
    %227 = vrot.lane.b32.xlu0 %v223, 126
    %v228 = vpop.permute.xlu0 %227
    %229 = vrot.lane.b32.xlu0 %v224, 126
    %v230 = vpop.permute.xlu0 %229
    %vm231 = vcmask 1031168
    %v232 = vsel %vm231, %v228, %v230
    %234 = vst [vmem:[#allocation3 + $0x8] sm:$0xff] %v232
    %v235 = vld [vmem:[%s2] sm:$0xf]
    %v236 = vld [vmem:[%s2 + $0x4] sm:$0xf]
    %v237 = vld [vmem:[%s2 + $0x8] sm:$0xf]
    %v238 = vld [vmem:[%s2 + $0xc] sm:$0xf]
    %v239 = vld [vmem:[%s2 + $0x10] sm:$0xf]
    %v240 = vld [vmem:[%s2 + $0x14] sm:$0xf]
    %v241 = vld [vmem:[%s2 + $0x18] sm:$0xf]
    %v242 = vld [vmem:[%s2 + $0x1c] sm:$0xf]
    %v243 = vld [vmem:[%s2 + $0x20] sm:$0xf]
    %v244 = vld [vmem:[%s2 + $0x24] sm:$0xf]
    %v245 = vld [vmem:[%s2 + $0x28] sm:$0xf]
    %v246 = vld [vmem:[%s2 + $0x2c] sm:$0xf]
    %v247 = vld [vmem:[%s2 + $0x30] sm:$0xf]
    %v248 = vld [vmem:[%s2 + $0x34] sm:$0xf]
    %v249 = vld [vmem:[%s2 + $0x38] sm:$0xf]
    %v250 = vld [vmem:[%s2 + $0x3c] sm:$0xf]
    %v251 = vld [vmem:[%s2 + $0x40] sm:$0xf]
    %v252 = vld [vmem:[%s2 + $0x44] sm:$0xf]
    %v253 = vld [vmem:[%s2 + $0x48] sm:$0xf]
    %v254 = vld [vmem:[%s2 + $0x4c] sm:$0xf]
    %v255 = vld [vmem:[%s2 + $0x50] sm:$0xf]
    %v256 = vld [vmem:[%s2 + $0x54] sm:$0xf]
    %v257 = vld [vmem:[%s2 + $0x58] sm:$0xf]
    %v258 = vld [vmem:[%s2 + $0x5c] sm:$0xf]
    %v259 = vld [vmem:[%s2 + $0x60] sm:$0xf]
    %v260 = vld [vmem:[%s2 + $0x64] sm:$0xf]
    %v261 = vld [vmem:[%s2 + $0x68] sm:$0xf]
    %v262 = vld [vmem:[%s2 + $0x6c] sm:$0xf]
    %v263 = vld [vmem:[%s2 + $0x70] sm:$0xf]
    %v264 = vld [vmem:[%s2 + $0x74] sm:$0xf]
    %v265 = vld [vmem:[%s2 + $0x78] sm:$0xf]
    %v266 = vld [vmem:[%s2 + $0x7c] sm:$0xf]
    %v267 = vld [vmem:[%s2 + $0x80] sm:$0xf]
    %v268 = vld [vmem:[%s2 + $0x84] sm:$0xf]
    %v269 = vld [vmem:[%s2 + $0x88] sm:$0xf]
    %v270 = vld [vmem:[%s2 + $0x8c] sm:$0xf]
    %v271 = vld [vmem:[%s2 + $0x90] sm:$0xf]
    %v272 = vld [vmem:[%s2 + $0x94] sm:$0xf]
    %v273 = vld [vmem:[%s2 + $0x98] sm:$0xf]
    %v274 = vld [vmem:[%s2 + $0x9c] sm:$0xf]
    %v275 = vld [vmem:[%s2 + $0xa0] sm:$0xf]
    %v276 = vld [vmem:[%s2 + $0xa4] sm:$0xf]
    %v277 = vld [vmem:[%s2 + $0xa8] sm:$0xf]
    %v278 = vld [vmem:[%s2 + $0xac] sm:$0xf]
    %v279 = vld [vmem:[%s2 + $0xb0] sm:$0xf]
    %v280 = vld [vmem:[%s2 + $0xb4] sm:$0xf]
    %v281 = vld [vmem:[%s2 + $0xb8] sm:$0xf]
    %v282 = vld [vmem:[%s2 + $0xbc] sm:$0xf]
    %v283 = vld [vmem:[%s2 + $0xc0] sm:$0xf]
    %v284 = vld [vmem:[%s2 + $0xc4] sm:$0xf]
    %v285 = vld [vmem:[%s2 + $0xc8] sm:$0xf]
    %v286 = vld [vmem:[%s2 + $0xcc] sm:$0xf]
    %v287 = vld [vmem:[%s2 + $0xd0] sm:$0xf]
    %v288 = vld [vmem:[%s2 + $0xd4] sm:$0xf]
    %v289 = vld [vmem:[%s2 + $0xd8] sm:$0xf]
    %v290 = vld [vmem:[%s2 + $0xdc] sm:$0xf]
    %v291 = vld [vmem:[%s2 + $0xe0] sm:$0xf]
    %v292 = vld [vmem:[%s2 + $0xe4] sm:$0xf]
    %v293 = vld [vmem:[%s2 + $0xe8] sm:$0xf]
    %v294 = vld [vmem:[%s2 + $0xec] sm:$0xf]
    %v295 = vld [vmem:[%s2 + $0xf0] sm:$0xf]
    %v296 = vld [vmem:[%s2 + $0xf4] sm:$0xf]
    %v297 = vld [vmem:[%s2 + $0xf8] sm:$0xf]
    %v298 = vld [vmem:[%s2 + $0xfc] sm:$0xf]
    %v299 = vld [vmem:[%s2 + $0x100] sm:$0xf]
    %v300 = vld [vmem:[%s2 + $0x104] sm:$0xf]
    %v301 = vld [vmem:[%s2 + $0x108] sm:$0xf]
    %v302 = vld [vmem:[%s2 + $0x10c] sm:$0xf]
    %v303 = vld [vmem:[%s2 + $0x110] sm:$0xf]
    %v304 = vld [vmem:[%s2 + $0x114] sm:$0xf]
    %v305 = vld [vmem:[%s2 + $0x118] sm:$0xf]
    %v306 = vld [vmem:[%s2 + $0x11c] sm:$0xf]
    %v307 = vld [vmem:[%s2 + $0x120] sm:$0xf]
    %v308 = vld [vmem:[%s2 + $0x124] sm:$0xf]
    %v309 = vld [vmem:[%s2 + $0x128] sm:$0xf]
    %v310 = vld [vmem:[%s2 + $0x12c] sm:$0xf]
    %v311 = vld [vmem:[%s2 + $0x130] sm:$0xf]
    %v312 = vld [vmem:[%s2 + $0x134] sm:$0xf]
    %v313 = vld [vmem:[%s2 + $0x138] sm:$0xf]
    %v314 = vld [vmem:[%s2 + $0x13c] sm:$0xf]
    %v315 = vld [vmem:[%s2 + $0x140] sm:$0xf]
    %v316 = vld [vmem:[%s2 + $0x144] sm:$0xf]
    %v317 = vld [vmem:[%s2 + $0x148] sm:$0xf]
    %v318 = vld [vmem:[%s2 + $0x14c] sm:$0xf]
    %v319 = vld [vmem:[%s2 + $0x150] sm:$0xf]
    %v320 = vld [vmem:[%s2 + $0x154] sm:$0xf]
    %v321 = vld [vmem:[%s2 + $0x158] sm:$0xf]
    %v322 = vld [vmem:[%s2 + $0x15c] sm:$0xf]
    %v323 = vld [vmem:[%s2 + $0x160] sm:$0xf]
    %v324 = vld [vmem:[%s2 + $0x164] sm:$0xf]
    %v325 = vld [vmem:[%s2 + $0x168] sm:$0xf]
    %v326 = vld [vmem:[%s2 + $0x16c] sm:$0xf]
    %v327 = vld [vmem:[%s2 + $0x170] sm:$0xf]
    %v328 = vld [vmem:[%s2 + $0x174] sm:$0xf]
    %v329 = vld [vmem:[%s2 + $0x178] sm:$0xf]
    %v330 = vld [vmem:[%s2 + $0x17c] sm:$0xf]
    %v331 = vld [vmem:[%s2 + $0x180] sm:$0xf]
    %v332 = vld [vmem:[%s2 + $0x184] sm:$0xf]
    %v333 = vld [vmem:[%s2 + $0x188] sm:$0xf]
    %v334 = vld [vmem:[%s2 + $0x18c] sm:$0xf]
    %v335 = vld [vmem:[#allocation3] sm:$0xff]
    %v336 = vld [vmem:[#allocation3 + $0x8] sm:$0xff]
    %v437 = vunpack.c.l.b16 %v235
    %v438 = vunpack.c.l.b16 %v236
    %v439 = vunpack.c.l.b16 %v237
    %v440 = vunpack.c.l.b16 %v238
    %v441 = vunpack.c.l.b16 %v239
    %v442 = vunpack.c.l.b16 %v240
    %v443 = vunpack.c.l.b16 %v241
    %v444 = vunpack.c.l.b16 %v242
    %v445 = vunpack.c.l.b16 %v243
    %v446 = vunpack.c.l.b16 %v244
    %v447 = vunpack.c.l.b16 %v245
    %v448 = vunpack.c.l.b16 %v246
    %v449 = vunpack.c.l.b16 %v247
    %v450 = vunpack.c.l.b16 %v248
    %v451 = vunpack.c.l.b16 %v249
    %v452 = vunpack.c.l.b16 %v250
    %v453 = vunpack.c.l.b16 %v251
    %v454 = vunpack.c.l.b16 %v252
    %v455 = vunpack.c.l.b16 %v253
    %v456 = vunpack.c.l.b16 %v254
    %v457 = vunpack.c.l.b16 %v255
    %v458 = vunpack.c.l.b16 %v256
    %v459 = vunpack.c.l.b16 %v257
    %v460 = vunpack.c.l.b16 %v258
    %v461 = vunpack.c.l.b16 %v259
    %v462 = vunpack.c.l.b16 %v260
    %v463 = vunpack.c.l.b16 %v261
    %v464 = vunpack.c.l.b16 %v262
    %v465 = vunpack.c.l.b16 %v263
    %v466 = vunpack.c.l.b16 %v264
    %v467 = vunpack.c.l.b16 %v265
    %v468 = vunpack.c.l.b16 %v266
    %v469 = vunpack.c.l.b16 %v267
    %v470 = vunpack.c.l.b16 %v268
    %v471 = vunpack.c.l.b16 %v269
    %v472 = vunpack.c.l.b16 %v270
    %v473 = vunpack.c.l.b16 %v271
    %v474 = vunpack.c.l.b16 %v272
    %v475 = vunpack.c.l.b16 %v273
    %v476 = vunpack.c.l.b16 %v274
    %v477 = vunpack.c.l.b16 %v275
    %v478 = vunpack.c.l.b16 %v276
    %v479 = vunpack.c.l.b16 %v277
    %v480 = vunpack.c.l.b16 %v278
    %v481 = vunpack.c.l.b16 %v279
    %v482 = vunpack.c.l.b16 %v280
    %v483 = vunpack.c.l.b16 %v281
    %v484 = vunpack.c.l.b16 %v282
    %v485 = vunpack.c.l.b16 %v283
    %v486 = vunpack.c.l.b16 %v284
    %v487 = vunpack.c.l.b16 %v285
    %v488 = vunpack.c.l.b16 %v286
    %v489 = vunpack.c.l.b16 %v287
    %v490 = vunpack.c.l.b16 %v288
    %v491 = vunpack.c.l.b16 %v289
    %v492 = vunpack.c.l.b16 %v290
    %v493 = vunpack.c.l.b16 %v291
    %v494 = vunpack.c.l.b16 %v292
    %v495 = vunpack.c.l.b16 %v293
    %v496 = vunpack.c.l.b16 %v294
    %v497 = vunpack.c.l.b16 %v295
    %v498 = vunpack.c.l.b16 %v296
    %v499 = vunpack.c.l.b16 %v297
    %v500 = vunpack.c.l.b16 %v298
    %v501 = vunpack.c.l.b16 %v299
    %v502 = vunpack.c.l.b16 %v300
    %v503 = vunpack.c.l.b16 %v301
    %v504 = vunpack.c.l.b16 %v302
    %v505 = vunpack.c.l.b16 %v303
    %v506 = vunpack.c.l.b16 %v304
    %v507 = vunpack.c.l.b16 %v305
    %v508 = vunpack.c.l.b16 %v306
    %v509 = vunpack.c.l.b16 %v307
    %v510 = vunpack.c.l.b16 %v308
    %v511 = vunpack.c.l.b16 %v309
    %v512 = vunpack.c.l.b16 %v310
    %v513 = vunpack.c.l.b16 %v311
    %v514 = vunpack.c.l.b16 %v312
    %v515 = vunpack.c.l.b16 %v313
    %v516 = vunpack.c.l.b16 %v314
    %v517 = vunpack.c.l.b16 %v315
    %v518 = vunpack.c.l.b16 %v316
    %v519 = vunpack.c.l.b16 %v317
    %v520 = vunpack.c.l.b16 %v318
    %v521 = vunpack.c.l.b16 %v319
    %v522 = vunpack.c.l.b16 %v320
    %v523 = vunpack.c.l.b16 %v321
    %v524 = vunpack.c.l.b16 %v322
    %v525 = vunpack.c.l.b16 %v323
    %v526 = vunpack.c.l.b16 %v324
    %v527 = vunpack.c.l.b16 %v325
    %v528 = vunpack.c.l.b16 %v326
    %v529 = vunpack.c.l.b16 %v327
    %v530 = vunpack.c.l.b16 %v328
    %v531 = vunpack.c.l.b16 %v329
    %v532 = vunpack.c.l.b16 %v330
    %v533 = vunpack.c.l.b16 %v331
    %v534 = vunpack.c.l.b16 %v332
    %v535 = vunpack.c.l.b16 %v333
    %v536 = vunpack.c.l.b16 %v334
    %v537 = vpack.c.b16 %v438, %v437
    %v538 = vpack.c.b16 %v440, %v439
    %v539 = vpack.c.b16 %v442, %v441
    %v540 = vpack.c.b16 %v444, %v443
    %v541 = vpack.c.b16 %v446, %v445
    %v542 = vpack.c.b16 %v448, %v447
    %v543 = vpack.c.b16 %v450, %v449
    %v544 = vpack.c.b16 %v452, %v451
    %v545 = vpack.c.b16 %v454, %v453
    %v546 = vpack.c.b16 %v456, %v455
    %v547 = vpack.c.b16 %v458, %v457
    %v548 = vpack.c.b16 %v460, %v459
    %v549 = vpack.c.b16 %v462, %v461
    %v550 = vpack.c.b16 %v464, %v463
    %v551 = vpack.c.b16 %v466, %v465
    %v552 = vpack.c.b16 %v468, %v467
    %v553 = vpack.c.b16 %v470, %v469
    %v554 = vpack.c.b16 %v472, %v471
    %v555 = vpack.c.b16 %v474, %v473
    %v556 = vpack.c.b16 %v476, %v475
    %v557 = vpack.c.b16 %v478, %v477
    %v558 = vpack.c.b16 %v480, %v479
    %v559 = vpack.c.b16 %v482, %v481
    %v560 = vpack.c.b16 %v484, %v483
    %v561 = vpack.c.b16 %v486, %v485
    %v562 = vpack.c.b16 %v488, %v487
    %v563 = vpack.c.b16 %v490, %v489
    %v564 = vpack.c.b16 %v492, %v491
    %v565 = vpack.c.b16 %v494, %v493
    %v566 = vpack.c.b16 %v496, %v495
    %v567 = vpack.c.b16 %v498, %v497
    %v568 = vpack.c.b16 %v500, %v499
    %v569 = vpack.c.b16 %v502, %v501
    %v570 = vpack.c.b16 %v504, %v503
    %v571 = vpack.c.b16 %v506, %v505
    %v572 = vpack.c.b16 %v508, %v507
    %v573 = vpack.c.b16 %v510, %v509
    %v574 = vpack.c.b16 %v512, %v511
    %v575 = vpack.c.b16 %v514, %v513
    %v576 = vpack.c.b16 %v516, %v515
    %v577 = vpack.c.b16 %v518, %v517
    %v578 = vpack.c.b16 %v520, %v519
    %v579 = vpack.c.b16 %v522, %v521
    %v580 = vpack.c.b16 %v524, %v523
    %v581 = vpack.c.b16 %v526, %v525
    %v582 = vpack.c.b16 %v528, %v527
    %v583 = vpack.c.b16 %v530, %v529
    %v584 = vpack.c.b16 %v532, %v531
    %v585 = vpack.c.b16 %v534, %v533
    %v586 = vpack.c.b16 %v536, %v535
    %v588 = vsel %vm72, %v537, 0
    %v591 = vsel %vm72, %v538, 0
    %v594 = vsel %vm72, %v539, 0
    %v597 = vsel %vm72, %v540, 0
    %v600 = vsel %vm72, %v541, 0
    %v603 = vsel %vm72, %v542, 0
    %v606 = vsel %vm72, %v543, 0
    %v609 = vsel %vm72, %v544, 0
    %v612 = vsel %vm72, %v545, 0
    %v615 = vsel %vm72, %v546, 0
    %v618 = vsel %vm72, %v547, 0
    %v621 = vsel %vm72, %v548, 0
    %v624 = vsel %vm72, %v549, 0
    %v627 = vsel %vm72, %v550, 0
    %v630 = vsel %vm72, %v551, 0
    %v633 = vsel %vm72, %v552, 0
    %v636 = vsel %vm72, %v553, 0
    %v639 = vsel %vm72, %v554, 0
    %v642 = vsel %vm72, %v555, 0
    %v645 = vsel %vm72, %v556, 0
    %v648 = vsel %vm72, %v557, 0
    %v651 = vsel %vm72, %v558, 0
    %v654 = vsel %vm72, %v559, 0
    %v657 = vsel %vm72, %v560, 0
    %v660 = vsel %vm72, %v561, 0
    %v663 = vsel %vm72, %v562, 0
    %v666 = vsel %vm72, %v563, 0
    %v669 = vsel %vm72, %v564, 0
    %v672 = vsel %vm72, %v565, 0
    %v675 = vsel %vm72, %v566, 0
    %v678 = vsel %vm72, %v567, 0
    %v681 = vsel %vm72, %v568, 0
    %v684 = vsel %vm72, %v569, 0
    %v687 = vsel %vm72, %v570, 0
    %v690 = vsel %vm72, %v571, 0
    %v693 = vsel %vm72, %v572, 0
    %v696 = vsel %vm72, %v573, 0
    %v699 = vsel %vm72, %v574, 0
    %v702 = vsel %vm72, %v575, 0
    %v705 = vsel %vm72, %v576, 0
    %v708 = vsel %vm72, %v577, 0
    %v711 = vsel %vm72, %v578, 0
    %v714 = vsel %vm72, %v579, 0
    %v717 = vsel %vm72, %v580, 0
    %v720 = vsel %vm72, %v581, 0
    %v723 = vsel %vm72, %v582, 0
    %v726 = vsel %vm72, %v583, 0
    %v729 = vsel %vm72, %v584, 0
    %v732 = vsel %vm72, %v585, 0
    %v735 = vsel %vm72, %v586, 0
    %737 = vmatprep.subr.bf16.mxu0 0
    %738 = vmatpush1.bf16.msra.mxu0 %v335
    %739 = vmatprep.subr.bf16.mxu0 0
    %740 = vmatpush1.bf16.msra.mxu0 %v336
    %741 = vmatprep.subr.bf16.mxu0 0
    %742 = vmatpush1.bf16.msra.mxu0 0
    %743 = vmatprep.subr.bf16.mxu0 0
    %744 = vmatpush1.bf16.msra.mxu0 0
    %745 = vmatprep.subr.bf16.mxu0 0
    %746 = vmatpush1.bf16.msra.mxu0 0
    %747 = vmatprep.subr.bf16.mxu0 0
    %748 = vmatpush1.bf16.msra.mxu0 0
    %749 = vmatprep.subr.bf16.mxu0 0
    %750 = vmatpush1.bf16.msra.mxu0 0
    %751 = vmatprep.subr.bf16.mxu0 0
    %752 = vmatpush1.bf16.msra.mxu0 0
    %753 = vmatprep.subr.bf16.mxu0 0
    %754 = vmatpush1.bf16.msra.mxu0 0
    %755 = vmatprep.subr.bf16.mxu0 0
    %756 = vmatpush1.bf16.msra.mxu0 0
    %757 = vmatprep.subr.bf16.mxu0 0
    %758 = vmatpush1.bf16.msra.mxu0 0
    %759 = vmatprep.subr.bf16.mxu0 0
    %760 = vmatpush1.bf16.msra.mxu0 0
    %761 = vmatprep.subr.bf16.mxu0 0
    %762 = vmatpush1.bf16.msra.mxu0 0
    %763 = vmatprep.subr.bf16.mxu0 0
    %764 = vmatpush1.bf16.msra.mxu0 0
    %765 = vmatprep.subr.bf16.mxu0 0
    %766 = vmatpush1.bf16.msra.mxu0 0
    %767 = vmatprep.subr.bf16.mxu0 0
    %768 = vmatpush1.bf16.msra.mxu0 0
    %769 = vmatprep.mubr.bf16.mxu0 0
    %770 = vmatmul.mubr.bf16.gmra.mrb[0].mxu0 %v588
    %v771 = vpop.f32.mrb[0].mxu0
    %v772 = vadd.f32 0.0, %v771
    %v773 = vpop.f32.mrb[0].mxu0
    %v774 = vpop.f32.mrb[0].mxu0
    %v775 = vadd.f32 0.0, %v774
    %v776 = vpop.f32.mrb[0].mxu0
    %777 = vmatprep.mubr.bf16.mxu0 0
    %778 = vmatmul.mubr.bf16.gmra.mrb[0].mxu0 %v591
    %v779 = vpop.f32.mrb[0].mxu0
    %v780 = vadd.f32 0.0, %v779
    %v781 = vpop.f32.mrb[0].mxu0
    %v782 = vpop.f32.mrb[0].mxu0
    %v783 = vadd.f32 0.0, %v782
    %v784 = vpop.f32.mrb[0].mxu0
    %785 = vmatprep.mubr.bf16.mxu0 0
    %786 = vmatmul.mubr.bf16.gmra.mrb[0].mxu0 %v594
    %v787 = vpop.f32.mrb[0].mxu0
    %v788 = vadd.f32 0.0, %v787
    %v789 = vpop.f32.mrb[0].mxu0
    %v790 = vpop.f32.mrb[0].mxu0
    %v791 = vadd.f32 0.0, %v790
    %v792 = vpop.f32.mrb[0].mxu0
    %793 = vmatprep.mubr.bf16.mxu0 0
    %794 = vmatmul.mubr.bf16.gmra.mrb[0].mxu0 %v597
    %v795 = vpop.f32.mrb[0].mxu0
    %v796 = vadd.f32 0.0, %v795
    %v797 = vpop.f32.mrb[0].mxu0
    %v798 = vpop.f32.mrb[0].mxu0
    %v799 = vadd.f32 0.0, %v798
    %v800 = vpop.f32.mrb[0].mxu0
    %801 = vmatprep.mubr.bf16.mxu0 0
    %802 = vmatmul.mubr.bf16.gmra.mrb[0].mxu0 %v600
    %v803 = vpop.f32.mrb[0].mxu0
    %v804 = vadd.f32 0.0, %v803
    %v805 = vpop.f32.mrb[0].mxu0
    %v806 = vpop.f32.mrb[0].mxu0
    %v807 = vadd.f32 0.0, %v806
    %v808 = vpop.f32.mrb[0].mxu0
    %809 = vmatprep.mubr.bf16.mxu0 0
    %810 = vmatmul.mubr.bf16.gmra.mrb[0].mxu0 %v603
    %v811 = vpop.f32.mrb[0].mxu0
    %v812 = vadd.f32 0.0, %v811
    %v813 = vpop.f32.mrb[0].mxu0
    %v814 = vpop.f32.mrb[0].mxu0
    %v815 = vadd.f32 0.0, %v814
    %v816 = vpop.f32.mrb[0].mxu0
    %817 = vmatprep.mubr.bf16.mxu0 0
    %818 = vmatmul.mubr.bf16.gmra.mrb[0].mxu0 %v606
    %v819 = vpop.f32.mrb[0].mxu0
    %v820 = vadd.f32 0.0, %v819
    %v821 = vpop.f32.mrb[0].mxu0
    %v822 = vpop.f32.mrb[0].mxu0
    %v823 = vadd.f32 0.0, %v822
    %v824 = vpop.f32.mrb[0].mxu0
    %825 = vmatprep.mubr.bf16.mxu0 0
    %826 = vmatmul.mubr.bf16.gmra.mrb[0].mxu0 %v609
    %v827 = vpop.f32.mrb[0].mxu0
    %v828 = vadd.f32 0.0, %v827
    %v829 = vpop.f32.mrb[0].mxu0
    %v830 = vpop.f32.mrb[0].mxu0
    %v831 = vadd.f32 0.0, %v830
    %v832 = vpop.f32.mrb[0].mxu0
    %833 = vmatprep.mubr.bf16.mxu0 0
    %834 = vmatmul.mubr.bf16.gmra.mrb[0].mxu0 %v612
    %v835 = vpop.f32.mrb[0].mxu0
    %v836 = vadd.f32 0.0, %v835
    %v837 = vpop.f32.mrb[0].mxu0
    %v838 = vpop.f32.mrb[0].mxu0
    %v839 = vadd.f32 0.0, %v838
    %v840 = vpop.f32.mrb[0].mxu0
    %841 = vmatprep.mubr.bf16.mxu0 0
    %842 = vmatmul.mubr.bf16.gmra.mrb[0].mxu0 %v615
    %v843 = vpop.f32.mrb[0].mxu0
    %v844 = vadd.f32 0.0, %v843
    %v845 = vpop.f32.mrb[0].mxu0
    %v846 = vpop.f32.mrb[0].mxu0
    %v847 = vadd.f32 0.0, %v846
    %v848 = vpop.f32.mrb[0].mxu0
    %849 = vmatprep.mubr.bf16.mxu0 0
    %850 = vmatmul.mubr.bf16.gmra.mrb[0].mxu0 %v618
    %v851 = vpop.f32.mrb[0].mxu0
    %v852 = vadd.f32 0.0, %v851
    %v853 = vpop.f32.mrb[0].mxu0
    %v854 = vpop.f32.mrb[0].mxu0
    %v855 = vadd.f32 0.0, %v854
    %v856 = vpop.f32.mrb[0].mxu0
    %857 = vmatprep.mubr.bf16.mxu0 0
    %858 = vmatmul.mubr.bf16.gmra.mrb[0].mxu0 %v621
    %v859 = vpop.f32.mrb[0].mxu0
    %v860 = vadd.f32 0.0, %v859
    %v861 = vpop.f32.mrb[0].mxu0
    %v862 = vpop.f32.mrb[0].mxu0
    %v863 = vadd.f32 0.0, %v862
    %v864 = vpop.f32.mrb[0].mxu0
    %865 = vmatprep.mubr.bf16.mxu0 0
    %866 = vmatmul.mubr.bf16.gmra.mrb[0].mxu0 %v624
    %v867 = vpop.f32.mrb[0].mxu0
    %v868 = vadd.f32 0.0, %v867
    %v869 = vpop.f32.mrb[0].mxu0
    %v870 = vpop.f32.mrb[0].mxu0
    %v871 = vadd.f32 0.0, %v870
    %v872 = vpop.f32.mrb[0].mxu0
    %873 = vmatprep.mubr.bf16.mxu0 0
    %874 = vmatmul.mubr.bf16.gmra.mrb[0].mxu0 %v627
    %v875 = vpop.f32.mrb[0].mxu0
    %v876 = vadd.f32 0.0, %v875
    %v877 = vpop.f32.mrb[0].mxu0
    %v878 = vpop.f32.mrb[0].mxu0
    %v879 = vadd.f32 0.0, %v878
    %v880 = vpop.f32.mrb[0].mxu0
    %881 = vmatprep.mubr.bf16.mxu0 0
    %882 = vmatmul.mubr.bf16.gmra.mrb[0].mxu0 %v630
    %v883 = vpop.f32.mrb[0].mxu0
    %v884 = vadd.f32 0.0, %v883
    %v885 = vpop.f32.mrb[0].mxu0
    %v886 = vpop.f32.mrb[0].mxu0
    %v887 = vadd.f32 0.0, %v886
    %v888 = vpop.f32.mrb[0].mxu0
    %889 = vmatprep.mubr.bf16.mxu0 0
    %890 = vmatmul.mubr.bf16.gmra.mrb[0].mxu0 %v633
    %v891 = vpop.f32.mrb[0].mxu0
    %v892 = vadd.f32 0.0, %v891
    %v893 = vpop.f32.mrb[0].mxu0
    %v894 = vpop.f32.mrb[0].mxu0
    %v895 = vadd.f32 0.0, %v894
    %v896 = vpop.f32.mrb[0].mxu0
    %897 = vmatprep.mubr.bf16.mxu0 0
    %898 = vmatmul.mubr.bf16.gmra.mrb[0].mxu0 %v636
    %v899 = vpop.f32.mrb[0].mxu0
    %v900 = vadd.f32 0.0, %v899
    %v901 = vpop.f32.mrb[0].mxu0
    %v902 = vpop.f32.mrb[0].mxu0
    %v903 = vadd.f32 0.0, %v902
    %v904 = vpop.f32.mrb[0].mxu0
    %905 = vmatprep.mubr.bf16.mxu0 0
    %906 = vmatmul.mubr.bf16.gmra.mrb[0].mxu0 %v639
    %v907 = vpop.f32.mrb[0].mxu0
    %v908 = vadd.f32 0.0, %v907
    %v909 = vpop.f32.mrb[0].mxu0
    %v910 = vpop.f32.mrb[0].mxu0
    %v911 = vadd.f32 0.0, %v910
    %v912 = vpop.f32.mrb[0].mxu0
    %913 = vmatprep.mubr.bf16.mxu0 0
    %914 = vmatmul.mubr.bf16.gmra.mrb[0].mxu0 %v642
    %v915 = vpop.f32.mrb[0].mxu0
    %v916 = vadd.f32 0.0, %v915
    %v917 = vpop.f32.mrb[0].mxu0
    %v918 = vpop.f32.mrb[0].mxu0
    %v919 = vadd.f32 0.0, %v918
    %v920 = vpop.f32.mrb[0].mxu0
    %921 = vmatprep.mubr.bf16.mxu0 0
    %922 = vmatmul.mubr.bf16.gmra.mrb[0].mxu0 %v645
    %v923 = vpop.f32.mrb[0].mxu0
    %v924 = vadd.f32 0.0, %v923
    %v925 = vpop.f32.mrb[0].mxu0
    %v926 = vpop.f32.mrb[0].mxu0
    %v927 = vadd.f32 0.0, %v926
    %v928 = vpop.f32.mrb[0].mxu0
    %929 = vmatprep.mubr.bf16.mxu0 0
    %930 = vmatmul.mubr.bf16.gmra.mrb[0].mxu0 %v648
    %v931 = vpop.f32.mrb[0].mxu0
    %v932 = vadd.f32 0.0, %v931
    %v933 = vpop.f32.mrb[0].mxu0
    %v934 = vpop.f32.mrb[0].mxu0
    %v935 = vadd.f32 0.0, %v934
    %v936 = vpop.f32.mrb[0].mxu0
    %937 = vmatprep.mubr.bf16.mxu0 0
    %938 = vmatmul.mubr.bf16.gmra.mrb[0].mxu0 %v651
    %v939 = vpop.f32.mrb[0].mxu0
    %v940 = vadd.f32 0.0, %v939
    %v941 = vpop.f32.mrb[0].mxu0
    %v942 = vpop.f32.mrb[0].mxu0
    %v943 = vadd.f32 0.0, %v942
    %v944 = vpop.f32.mrb[0].mxu0
    %945 = vmatprep.mubr.bf16.mxu0 0
    %946 = vmatmul.mubr.bf16.gmra.mrb[0].mxu0 %v654
    %v947 = vpop.f32.mrb[0].mxu0
    %v948 = vadd.f32 0.0, %v947
    %v949 = vpop.f32.mrb[0].mxu0
    %v950 = vpop.f32.mrb[0].mxu0
    %v951 = vadd.f32 0.0, %v950
    %v952 = vpop.f32.mrb[0].mxu0
    %953 = vmatprep.mubr.bf16.mxu0 0
    %954 = vmatmul.mubr.bf16.gmra.mrb[0].mxu0 %v657
    %v955 = vpop.f32.mrb[0].mxu0
    %v956 = vadd.f32 0.0, %v955
    %v957 = vpop.f32.mrb[0].mxu0
    %v958 = vpop.f32.mrb[0].mxu0
    %v959 = vadd.f32 0.0, %v958
    %v960 = vpop.f32.mrb[0].mxu0
    %961 = vmatprep.mubr.bf16.mxu0 0
    %962 = vmatmul.mubr.bf16.gmra.mrb[0].mxu0 %v660
    %v963 = vpop.f32.mrb[0].mxu0
    %v964 = vadd.f32 0.0, %v963
    %v965 = vpop.f32.mrb[0].mxu0
    %v966 = vpop.f32.mrb[0].mxu0
    %v967 = vadd.f32 0.0, %v966
    %v968 = vpop.f32.mrb[0].mxu0
    %969 = vmatprep.mubr.bf16.mxu0 0
    %970 = vmatmul.mubr.bf16.gmra.mrb[0].mxu0 %v663
    %v971 = vpop.f32.mrb[0].mxu0
    %v972 = vadd.f32 0.0, %v971
    %v973 = vpop.f32.mrb[0].mxu0
    %v974 = vpop.f32.mrb[0].mxu0
    %v975 = vadd.f32 0.0, %v974
    %v976 = vpop.f32.mrb[0].mxu0
    %977 = vmatprep.mubr.bf16.mxu0 0
    %978 = vmatmul.mubr.bf16.gmra.mrb[0].mxu0 %v666
    %v979 = vpop.f32.mrb[0].mxu0
    %v980 = vadd.f32 0.0, %v979
    %v981 = vpop.f32.mrb[0].mxu0
    %v982 = vpop.f32.mrb[0].mxu0
    %v983 = vadd.f32 0.0, %v982
    %v984 = vpop.f32.mrb[0].mxu0
    %985 = vmatprep.mubr.bf16.mxu0 0
    %986 = vmatmul.mubr.bf16.gmra.mrb[0].mxu0 %v669
    %v987 = vpop.f32.mrb[0].mxu0
    %v988 = vadd.f32 0.0, %v987
    %v989 = vpop.f32.mrb[0].mxu0
    %v990 = vpop.f32.mrb[0].mxu0
    %v991 = vadd.f32 0.0, %v990
    %v992 = vpop.f32.mrb[0].mxu0
    %993 = vmatprep.mubr.bf16.mxu0 0
    %994 = vmatmul.mubr.bf16.gmra.mrb[0].mxu0 %v672
    %v995 = vpop.f32.mrb[0].mxu0
    %v996 = vadd.f32 0.0, %v995
    %v997 = vpop.f32.mrb[0].mxu0
    %v998 = vpop.f32.mrb[0].mxu0
    %v999 = vadd.f32 0.0, %v998
    %v1000 = vpop.f32.mrb[0].mxu0
    %1001 = vmatprep.mubr.bf16.mxu0 0
    %1002 = vmatmul.mubr.bf16.gmra.mrb[0].mxu0 %v675
    %v1003 = vpop.f32.mrb[0].mxu0
    %v1004 = vadd.f32 0.0, %v1003
    %v1005 = vpop.f32.mrb[0].mxu0
    %v1006 = vpop.f32.mrb[0].mxu0
    %v1007 = vadd.f32 0.0, %v1006
    %v1008 = vpop.f32.mrb[0].mxu0
    %1009 = vmatprep.mubr.bf16.mxu0 0
    %1010 = vmatmul.mubr.bf16.gmra.mrb[0].mxu0 %v678
    %v1011 = vpop.f32.mrb[0].mxu0
    %v1012 = vadd.f32 0.0, %v1011
    %v1013 = vpop.f32.mrb[0].mxu0
    %v1014 = vpop.f32.mrb[0].mxu0
    %v1015 = vadd.f32 0.0, %v1014
    %v1016 = vpop.f32.mrb[0].mxu0
    %1017 = vmatprep.mubr.bf16.mxu0 0
    %1018 = vmatmul.mubr.bf16.gmra.mrb[0].mxu0 %v681
    %v1019 = vpop.f32.mrb[0].mxu0
    %v1020 = vadd.f32 0.0, %v1019
    %v1021 = vpop.f32.mrb[0].mxu0
    %v1022 = vpop.f32.mrb[0].mxu0
    %v1023 = vadd.f32 0.0, %v1022
    %v1024 = vpop.f32.mrb[0].mxu0
    %1025 = vmatprep.mubr.bf16.mxu0 0
    %1026 = vmatmul.mubr.bf16.gmra.mrb[0].mxu0 %v684
    %v1027 = vpop.f32.mrb[0].mxu0
    %v1028 = vadd.f32 0.0, %v1027
    %v1029 = vpop.f32.mrb[0].mxu0
    %v1030 = vpop.f32.mrb[0].mxu0
    %v1031 = vadd.f32 0.0, %v1030
    %v1032 = vpop.f32.mrb[0].mxu0
    %1033 = vmatprep.mubr.bf16.mxu0 0
    %1034 = vmatmul.mubr.bf16.gmra.mrb[0].mxu0 %v687
    %v1035 = vpop.f32.mrb[0].mxu0
    %v1036 = vadd.f32 0.0, %v1035
    %v1037 = vpop.f32.mrb[0].mxu0
    %v1038 = vpop.f32.mrb[0].mxu0
    %v1039 = vadd.f32 0.0, %v1038
    %v1040 = vpop.f32.mrb[0].mxu0
    %1041 = vmatprep.mubr.bf16.mxu0 0
    %1042 = vmatmul.mubr.bf16.gmra.mrb[0].mxu0 %v690
    %v1043 = vpop.f32.mrb[0].mxu0
    %v1044 = vadd.f32 0.0, %v1043
    %v1045 = vpop.f32.mrb[0].mxu0
    %v1046 = vpop.f32.mrb[0].mxu0
    %v1047 = vadd.f32 0.0, %v1046
    %v1048 = vpop.f32.mrb[0].mxu0
    %1049 = vmatprep.mubr.bf16.mxu0 0
    %1050 = vmatmul.mubr.bf16.gmra.mrb[0].mxu0 %v693
    %v1051 = vpop.f32.mrb[0].mxu0
    %v1052 = vadd.f32 0.0, %v1051
    %v1053 = vpop.f32.mrb[0].mxu0
    %v1054 = vpop.f32.mrb[0].mxu0
    %v1055 = vadd.f32 0.0, %v1054
    %v1056 = vpop.f32.mrb[0].mxu0
    %1057 = vmatprep.mubr.bf16.mxu0 0
    %1058 = vmatmul.mubr.bf16.gmra.mrb[0].mxu0 %v696
    %v1059 = vpop.f32.mrb[0].mxu0
    %v1060 = vadd.f32 0.0, %v1059
    %v1061 = vpop.f32.mrb[0].mxu0
    %v1062 = vpop.f32.mrb[0].mxu0
    %v1063 = vadd.f32 0.0, %v1062
    %v1064 = vpop.f32.mrb[0].mxu0
    %1065 = vmatprep.mubr.bf16.mxu0 0
    %1066 = vmatmul.mubr.bf16.gmra.mrb[0].mxu0 %v699
    %v1067 = vpop.f32.mrb[0].mxu0
    %v1068 = vadd.f32 0.0, %v1067
    %v1069 = vpop.f32.mrb[0].mxu0
    %v1070 = vpop.f32.mrb[0].mxu0
    %v1071 = vadd.f32 0.0, %v1070
    %v1072 = vpop.f32.mrb[0].mxu0
    %1073 = vmatprep.mubr.bf16.mxu0 0
    %1074 = vmatmul.mubr.bf16.gmra.mrb[0].mxu0 %v702
    %v1075 = vpop.f32.mrb[0].mxu0
    %v1076 = vadd.f32 0.0, %v1075
    %v1077 = vpop.f32.mrb[0].mxu0
    %v1078 = vpop.f32.mrb[0].mxu0
    %v1079 = vadd.f32 0.0, %v1078
    %v1080 = vpop.f32.mrb[0].mxu0
    %1081 = vmatprep.mubr.bf16.mxu0 0
    %1082 = vmatmul.mubr.bf16.gmra.mrb[0].mxu0 %v705
    %v1083 = vpop.f32.mrb[0].mxu0
    %v1084 = vadd.f32 0.0, %v1083
    %v1085 = vpop.f32.mrb[0].mxu0
    %v1086 = vpop.f32.mrb[0].mxu0
    %v1087 = vadd.f32 0.0, %v1086
    %v1088 = vpop.f32.mrb[0].mxu0
    %1089 = vmatprep.mubr.bf16.mxu0 0
    %1090 = vmatmul.mubr.bf16.gmra.mrb[0].mxu0 %v708
    %v1091 = vpop.f32.mrb[0].mxu0
    %v1092 = vadd.f32 0.0, %v1091
    %v1093 = vpop.f32.mrb[0].mxu0
    %v1094 = vpop.f32.mrb[0].mxu0
    %v1095 = vadd.f32 0.0, %v1094
    %v1096 = vpop.f32.mrb[0].mxu0
    %1097 = vmatprep.mubr.bf16.mxu0 0
    %1098 = vmatmul.mubr.bf16.gmra.mrb[0].mxu0 %v711
    %v1099 = vpop.f32.mrb[0].mxu0
    %v1100 = vadd.f32 0.0, %v1099
    %v1101 = vpop.f32.mrb[0].mxu0
    %v1102 = vpop.f32.mrb[0].mxu0
    %v1103 = vadd.f32 0.0, %v1102
    %v1104 = vpop.f32.mrb[0].mxu0
    %1105 = vmatprep.mubr.bf16.mxu0 0
    %1106 = vmatmul.mubr.bf16.gmra.mrb[0].mxu0 %v714
    %v1107 = vpop.f32.mrb[0].mxu0
    %v1108 = vadd.f32 0.0, %v1107
    %v1109 = vpop.f32.mrb[0].mxu0
    %v1110 = vpop.f32.mrb[0].mxu0
    %v1111 = vadd.f32 0.0, %v1110
    %v1112 = vpop.f32.mrb[0].mxu0
    %1113 = vmatprep.mubr.bf16.mxu0 0
    %1114 = vmatmul.mubr.bf16.gmra.mrb[0].mxu0 %v717
    %v1115 = vpop.f32.mrb[0].mxu0
    %v1116 = vadd.f32 0.0, %v1115
    %v1117 = vpop.f32.mrb[0].mxu0
    %v1118 = vpop.f32.mrb[0].mxu0
    %v1119 = vadd.f32 0.0, %v1118
    %v1120 = vpop.f32.mrb[0].mxu0
    %1121 = vmatprep.mubr.bf16.mxu0 0
    %1122 = vmatmul.mubr.bf16.gmra.mrb[0].mxu0 %v720
    %v1123 = vpop.f32.mrb[0].mxu0
    %v1124 = vadd.f32 0.0, %v1123
    %v1125 = vpop.f32.mrb[0].mxu0
    %v1126 = vpop.f32.mrb[0].mxu0
    %v1127 = vadd.f32 0.0, %v1126
    %v1128 = vpop.f32.mrb[0].mxu0
    %1129 = vmatprep.mubr.bf16.mxu0 0
    %1130 = vmatmul.mubr.bf16.gmra.mrb[0].mxu0 %v723
    %v1131 = vpop.f32.mrb[0].mxu0
    %v1132 = vadd.f32 0.0, %v1131
    %v1133 = vpop.f32.mrb[0].mxu0
    %v1134 = vpop.f32.mrb[0].mxu0
    %v1135 = vadd.f32 0.0, %v1134
    %v1136 = vpop.f32.mrb[0].mxu0
    %1137 = vmatprep.mubr.bf16.mxu0 0
    %1138 = vmatmul.mubr.bf16.gmra.mrb[0].mxu0 %v726
    %v1139 = vpop.f32.mrb[0].mxu0
    %v1140 = vadd.f32 0.0, %v1139
    %v1141 = vpop.f32.mrb[0].mxu0
    %v1142 = vpop.f32.mrb[0].mxu0
    %v1143 = vadd.f32 0.0, %v1142
    %v1144 = vpop.f32.mrb[0].mxu0
    %1145 = vmatprep.mubr.bf16.mxu0 0
    %1146 = vmatmul.mubr.bf16.gmra.mrb[0].mxu0 %v729
    %v1147 = vpop.f32.mrb[0].mxu0
    %v1148 = vadd.f32 0.0, %v1147
    %v1149 = vpop.f32.mrb[0].mxu0
    %v1150 = vpop.f32.mrb[0].mxu0
    %v1151 = vadd.f32 0.0, %v1150
    %v1152 = vpop.f32.mrb[0].mxu0
    %1153 = vmatprep.mubr.bf16.mxu0 0
    %1154 = vmatmul.mubr.bf16.gmra.mrb[0].mxu0 %v732
    %v1155 = vpop.f32.mrb[0].mxu0
    %v1156 = vadd.f32 0.0, %v1155
    %v1157 = vpop.f32.mrb[0].mxu0
    %v1158 = vpop.f32.mrb[0].mxu0
    %v1159 = vadd.f32 0.0, %v1158
    %v1160 = vpop.f32.mrb[0].mxu0
    %1161 = vmatprep.mubr.bf16.mxu0 0
    %1162 = vmatmul.mubr.bf16.gmra.mrb[0].mxu0 %v735
    %v1163 = vpop.f32.mrb[0].mxu0
    %v1164 = vadd.f32 0.0, %v1163
    %v1165 = vpop.f32.mrb[0].mxu0
    %v1166 = vpop.f32.mrb[0].mxu0
    %v1167 = vadd.f32 0.0, %v1166
    %v1168 = vpop.f32.mrb[0].mxu0
    %1169 = vdwg.mxu0
    %v1170 = vmax.f32 %v772, 0.0
    %v1171 = vmax.f32 %v775, 0.0
    %v1172 = vmax.f32 %v780, 0.0
    %v1173 = vmax.f32 %v783, 0.0
    %v1174 = vmax.f32 %v788, 0.0
    %v1175 = vmax.f32 %v791, 0.0
    %v1176 = vmax.f32 %v796, 0.0
    %v1177 = vmax.f32 %v799, 0.0
    %v1178 = vmax.f32 %v804, 0.0
    %v1179 = vmax.f32 %v807, 0.0
    %v1180 = vmax.f32 %v812, 0.0
    %v1181 = vmax.f32 %v815, 0.0
    %v1182 = vmax.f32 %v820, 0.0
    %v1183 = vmax.f32 %v823, 0.0
    %v1184 = vmax.f32 %v828, 0.0
    %v1185 = vmax.f32 %v831, 0.0
    %v1186 = vmax.f32 %v836, 0.0
    %v1187 = vmax.f32 %v839, 0.0
    %v1188 = vmax.f32 %v844, 0.0
    %v1189 = vmax.f32 %v847, 0.0
    %v1190 = vmax.f32 %v852, 0.0
    %v1191 = vmax.f32 %v855, 0.0
    %v1192 = vmax.f32 %v860, 0.0
    %v1193 = vmax.f32 %v863, 0.0
    %v1194 = vmax.f32 %v868, 0.0
    %v1195 = vmax.f32 %v871, 0.0
    %v1196 = vmax.f32 %v876, 0.0
    %v1197 = vmax.f32 %v879, 0.0
    %v1198 = vmax.f32 %v884, 0.0
    %v1199 = vmax.f32 %v887, 0.0
    %v1200 = vmax.f32 %v892, 0.0
    %v1201 = vmax.f32 %v895, 0.0
    %v1202 = vmax.f32 %v900, 0.0
    %v1203 = vmax.f32 %v903, 0.0
    %v1204 = vmax.f32 %v908, 0.0
    %v1205 = vmax.f32 %v911, 0.0
    %v1206 = vmax.f32 %v916, 0.0
    %v1207 = vmax.f32 %v919, 0.0
    %v1208 = vmax.f32 %v924, 0.0
    %v1209 = vmax.f32 %v927, 0.0
    %v1210 = vmax.f32 %v932, 0.0
    %v1211 = vmax.f32 %v935, 0.0
    %v1212 = vmax.f32 %v940, 0.0
    %v1213 = vmax.f32 %v943, 0.0
    %v1214 = vmax.f32 %v948, 0.0
    %v1215 = vmax.f32 %v951, 0.0
    %v1216 = vmax.f32 %v956, 0.0
    %v1217 = vmax.f32 %v959, 0.0
    %v1218 = vmax.f32 %v964, 0.0
    %v1219 = vmax.f32 %v967, 0.0
    %v1220 = vmax.f32 %v972, 0.0
    %v1221 = vmax.f32 %v975, 0.0
    %v1222 = vmax.f32 %v980, 0.0
    %v1223 = vmax.f32 %v983, 0.0
    %v1224 = vmax.f32 %v988, 0.0
    %v1225 = vmax.f32 %v991, 0.0
    %v1226 = vmax.f32 %v996, 0.0
    %v1227 = vmax.f32 %v999, 0.0
    %v1228 = vmax.f32 %v1004, 0.0
    %v1229 = vmax.f32 %v1007, 0.0
    %v1230 = vmax.f32 %v1012, 0.0
    %v1231 = vmax.f32 %v1015, 0.0
    %v1232 = vmax.f32 %v1020, 0.0
    %v1233 = vmax.f32 %v1023, 0.0
    %v1234 = vmax.f32 %v1028, 0.0
    %v1235 = vmax.f32 %v1031, 0.0
    %v1236 = vmax.f32 %v1036, 0.0
    %v1237 = vmax.f32 %v1039, 0.0
    %v1238 = vmax.f32 %v1044, 0.0
    %v1239 = vmax.f32 %v1047, 0.0
    %v1240 = vmax.f32 %v1052, 0.0
    %v1241 = vmax.f32 %v1055, 0.0
    %v1242 = vmax.f32 %v1060, 0.0
    %v1243 = vmax.f32 %v1063, 0.0
    %v1244 = vmax.f32 %v1068, 0.0
    %v1245 = vmax.f32 %v1071, 0.0
    %v1246 = vmax.f32 %v1076, 0.0
    %v1247 = vmax.f32 %v1079, 0.0
    %v1248 = vmax.f32 %v1084, 0.0
    %v1249 = vmax.f32 %v1087, 0.0
    %v1250 = vmax.f32 %v1092, 0.0
    %v1251 = vmax.f32 %v1095, 0.0
    %v1252 = vmax.f32 %v1100, 0.0
    %v1253 = vmax.f32 %v1103, 0.0
    %v1254 = vmax.f32 %v1108, 0.0
    %v1255 = vmax.f32 %v1111, 0.0
    %v1256 = vmax.f32 %v1116, 0.0
    %v1257 = vmax.f32 %v1119, 0.0
    %v1258 = vmax.f32 %v1124, 0.0
    %v1259 = vmax.f32 %v1127, 0.0
    %v1260 = vmax.f32 %v1132, 0.0
    %v1261 = vmax.f32 %v1135, 0.0
    %v1262 = vmax.f32 %v1140, 0.0
    %v1263 = vmax.f32 %v1143, 0.0
    %v1264 = vmax.f32 %v1148, 0.0
    %v1265 = vmax.f32 %v1151, 0.0
    %v1266 = vmax.f32 %v1156, 0.0
    %v1267 = vmax.f32 %v1159, 0.0
    %v1268 = vmax.f32 %v1164, 0.0
    %v1269 = vmax.f32 %v1167, 0.0
    %v1270 = vld [vmem:[%s3] sm:$0xff]
    %v1271 = vld [vmem:[%s3 + $0x8] sm:$0xff]
    %v1272 = vld [vmem:[%s3 + $0x10] sm:$0xff]
    %v1273 = vld [vmem:[%s3 + $0x18] sm:$0xff]
    %v1274 = vld [vmem:[%s3 + $0x20] sm:$0xff]
    %v1275 = vld [vmem:[%s3 + $0x28] sm:$0xff]
    %v1276 = vld [vmem:[%s3 + $0x30] sm:$0xff]
    %v1277 = vld [vmem:[%s3 + $0x38] sm:$0xff]
    %v1278 = vld [vmem:[%s3 + $0x40] sm:$0xff]
    %v1279 = vld [vmem:[%s3 + $0x48] sm:$0xff]
    %v1280 = vld [vmem:[%s3 + $0x50] sm:$0xff]
    %v1281 = vld [vmem:[%s3 + $0x58] sm:$0xff]
    %v1282 = vld [vmem:[%s3 + $0x60] sm:$0xff]
    %v1283 = vld [vmem:[%s3 + $0x68] sm:$0xff]
    %v1285 = vsel %vm72, %v1276, 0
    %v1288 = vsel %vm72, %v1283, 0
    %1290 = vmatprep.subr.mxu0 0.0
    %1291 = vmatpush1.msra.mxu0 %v1170
    %1292 = vmatprep.subr.mxu0 0.0
    %1293 = vmatpush1.msra.mxu0 %v1171
    %1294 = vmatprep.subr.mxu0 0.0
    %1295 = vmatpush1.msra.mxu0 %v1172
    %1296 = vmatprep.subr.mxu0 0.0
    %1297 = vmatpush1.msra.mxu0 %v1173
    %1298 = vmatprep.subr.mxu0 0.0
    %1299 = vmatpush1.msra.mxu0 %v1174
    %1300 = vmatprep.subr.mxu0 0.0
    %1301 = vmatpush1.msra.mxu0 %v1175
    %1302 = vmatprep.subr.mxu0 0.0
    %1303 = vmatpush1.msra.mxu0 %v1176
    %1304 = vmatprep.subr.mxu0 0.0
    %1305 = vmatpush1.msra.mxu0 %v1177
    %1306 = vmatprep.subr.mxu0 0.0
    %1307 = vmatpush1.msra.mxu0 %v1178
    %1308 = vmatprep.subr.mxu0 0.0
    %1309 = vmatpush1.msra.mxu0 %v1179
    %1310 = vmatprep.subr.mxu0 0.0
    %1311 = vmatpush1.msra.mxu0 %v1180
    %1312 = vmatprep.subr.mxu0 0.0
    %1313 = vmatpush1.msra.mxu0 %v1181
    %1314 = vmatprep.subr.mxu0 0.0
    %1315 = vmatpush1.msra.mxu0 %v1182
    %1316 = vmatprep.subr.mxu0 0.0
    %1317 = vmatpush1.msra.mxu0 %v1183
    %1318 = vmatprep.subr.mxu0 0.0
    %1319 = vmatpush1.msra.mxu0 %v1184
    %1320 = vmatprep.subr.mxu0 0.0
    %1321 = vmatpush1.msra.mxu0 %v1185
    %1322 = vmatprep.subr.mxu0 0.0
    %1323 = vmatpush1.msra.mxu0 %v1186
    %1324 = vmatprep.subr.mxu0 0.0
    %1325 = vmatpush1.msra.mxu0 %v1187
    %1326 = vmatprep.subr.mxu0 0.0
    %1327 = vmatpush1.msra.mxu0 %v1188
    %1328 = vmatprep.subr.mxu0 0.0
    %1329 = vmatpush1.msra.mxu0 %v1189
    %1330 = vmatprep.subr.mxu0 0.0
    %1331 = vmatpush1.msra.mxu0 %v1190
    %1332 = vmatprep.subr.mxu0 0.0
    %1333 = vmatpush1.msra.mxu0 %v1191
    %1334 = vmatprep.subr.mxu0 0.0
    %1335 = vmatpush1.msra.mxu0 %v1192
    %1336 = vmatprep.subr.mxu0 0.0
    %1337 = vmatpush1.msra.mxu0 %v1193
    %1338 = vmatprep.subr.mxu0 0.0
    %1339 = vmatpush1.msra.mxu0 %v1194
    %1340 = vmatprep.subr.mxu0 0.0
    %1341 = vmatpush1.msra.mxu0 %v1195
    %1342 = vmatprep.subr.mxu0 0.0
    %1343 = vmatpush1.msra.mxu0 %v1196
    %1344 = vmatprep.subr.mxu0 0.0
    %1345 = vmatpush1.msra.mxu0 %v1197
    %1346 = vmatprep.subr.mxu0 0.0
    %1347 = vmatpush1.msra.mxu0 %v1198
    %1348 = vmatprep.subr.mxu0 0.0
    %1349 = vmatpush1.msra.mxu0 %v1199
    %1350 = vmatprep.subr.mxu0 0.0
    %1351 = vmatpush1.msra.mxu0 %v1200
    %1352 = vmatprep.subr.mxu0 0.0
    %1353 = vmatpush1.msra.mxu0 %v1201
    %1354 = vmatprep.mubr.f32.mxu0 %v1271
    %1355 = vmatmul.mubr.f32.gmra.mrb[0].mxu0 %v1270
    %v1356 = vpop.f32.mrb[0].mxu0
    %v1357 = vadd.f32 0.0, %v1356
    %v1358 = vpop.f32.mrb[0].mxu0
    %1359 = vmatprep.mubr.f32.mxu0 %v1278
    %1360 = vmatmul.mubr.f32.gmra.mrb[0].mxu0 %v1277
    %v1361 = vpop.f32.mrb[0].mxu0
    %v1362 = vadd.f32 0.0, %v1361
    %v1363 = vpop.f32.mrb[0].mxu0
    %1364 = vdwg.mxu0
    %1365 = vmatprep.subr.mxu0 0.0
    %1366 = vmatpush1.msra.mxu0 %v1202
    %1367 = vmatprep.subr.mxu0 0.0
    %1368 = vmatpush1.msra.mxu0 %v1203
    %1369 = vmatprep.subr.mxu0 0.0
    %1370 = vmatpush1.msra.mxu0 %v1204
    %1371 = vmatprep.subr.mxu0 0.0
    %1372 = vmatpush1.msra.mxu0 %v1205
    %1373 = vmatprep.subr.mxu0 0.0
    %1374 = vmatpush1.msra.mxu0 %v1206
    %1375 = vmatprep.subr.mxu0 0.0
    %1376 = vmatpush1.msra.mxu0 %v1207
    %1377 = vmatprep.subr.mxu0 0.0
    %1378 = vmatpush1.msra.mxu0 %v1208
    %1379 = vmatprep.subr.mxu0 0.0
    %1380 = vmatpush1.msra.mxu0 %v1209
    %1381 = vmatprep.subr.mxu0 0.0
    %1382 = vmatpush1.msra.mxu0 %v1210
    %1383 = vmatprep.subr.mxu0 0.0
    %1384 = vmatpush1.msra.mxu0 %v1211
    %1385 = vmatprep.subr.mxu0 0.0
    %1386 = vmatpush1.msra.mxu0 %v1212
    %1387 = vmatprep.subr.mxu0 0.0
    %1388 = vmatpush1.msra.mxu0 %v1213
    %1389 = vmatprep.subr.mxu0 0.0
    %1390 = vmatpush1.msra.mxu0 %v1214
    %1391 = vmatprep.subr.mxu0 0.0
    %1392 = vmatpush1.msra.mxu0 %v1215
    %1393 = vmatprep.subr.mxu0 0.0
    %1394 = vmatpush1.msra.mxu0 %v1216
    %1395 = vmatprep.subr.mxu0 0.0
    %1396 = vmatpush1.msra.mxu0 %v1217
    %1397 = vmatprep.subr.mxu0 0.0
    %1398 = vmatpush1.msra.mxu0 %v1218
    %1399 = vmatprep.subr.mxu0 0.0
    %1400 = vmatpush1.msra.mxu0 %v1219
    %1401 = vmatprep.subr.mxu0 0.0
    %1402 = vmatpush1.msra.mxu0 %v1220
    %1403 = vmatprep.subr.mxu0 0.0
    %1404 = vmatpush1.msra.mxu0 %v1221
    %1405 = vmatprep.subr.mxu0 0.0
    %1406 = vmatpush1.msra.mxu0 %v1222
    %1407 = vmatprep.subr.mxu0 0.0
    %1408 = vmatpush1.msra.mxu0 %v1223
    %1409 = vmatprep.subr.mxu0 0.0
    %1410 = vmatpush1.msra.mxu0 %v1224
    %1411 = vmatprep.subr.mxu0 0.0
    %1412 = vmatpush1.msra.mxu0 %v1225
    %1413 = vmatprep.subr.mxu0 0.0
    %1414 = vmatpush1.msra.mxu0 %v1226
    %1415 = vmatprep.subr.mxu0 0.0
    %1416 = vmatpush1.msra.mxu0 %v1227
    %1417 = vmatprep.subr.mxu0 0.0
    %1418 = vmatpush1.msra.mxu0 %v1228
    %1419 = vmatprep.subr.mxu0 0.0
    %1420 = vmatpush1.msra.mxu0 %v1229
    %1421 = vmatprep.subr.mxu0 0.0
    %1422 = vmatpush1.msra.mxu0 %v1230
    %1423 = vmatprep.subr.mxu0 0.0
    %1424 = vmatpush1.msra.mxu0 %v1231
    %1425 = vmatprep.subr.mxu0 0.0
    %1426 = vmatpush1.msra.mxu0 %v1232
    %1427 = vmatprep.subr.mxu0 0.0
    %1428 = vmatpush1.msra.mxu0 %v1233
    %1429 = vmatprep.mubr.f32.mxu0 %v1273
    %1430 = vmatmul.mubr.f32.gmra.mrb[0].mxu0 %v1272
    %v1431 = vpop.f32.mrb[0].mxu0
    %v1432 = vadd.f32 %v1357, %v1431
    %v1433 = vpop.f32.mrb[0].mxu0
    %1434 = vmatprep.mubr.f32.mxu0 %v1280
    %1435 = vmatmul.mubr.f32.gmra.mrb[0].mxu0 %v1279
    %v1436 = vpop.f32.mrb[0].mxu0
    %v1437 = vadd.f32 %v1362, %v1436
    %v1438 = vpop.f32.mrb[0].mxu0
    %1439 = vdwg.mxu0
    %1440 = vmatprep.subr.mxu0 0.0
    %1441 = vmatpush1.msra.mxu0 %v1234
    %1442 = vmatprep.subr.mxu0 0.0
    %1443 = vmatpush1.msra.mxu0 %v1235
    %1444 = vmatprep.subr.mxu0 0.0
    %1445 = vmatpush1.msra.mxu0 %v1236
    %1446 = vmatprep.subr.mxu0 0.0
    %1447 = vmatpush1.msra.mxu0 %v1237
    %1448 = vmatprep.subr.mxu0 0.0
    %1449 = vmatpush1.msra.mxu0 %v1238
    %1450 = vmatprep.subr.mxu0 0.0
    %1451 = vmatpush1.msra.mxu0 %v1239
    %1452 = vmatprep.subr.mxu0 0.0
    %1453 = vmatpush1.msra.mxu0 %v1240
    %1454 = vmatprep.subr.mxu0 0.0
    %1455 = vmatpush1.msra.mxu0 %v1241
    %1456 = vmatprep.subr.mxu0 0.0
    %1457 = vmatpush1.msra.mxu0 %v1242
    %1458 = vmatprep.subr.mxu0 0.0
    %1459 = vmatpush1.msra.mxu0 %v1243
    %1460 = vmatprep.subr.mxu0 0.0
    %1461 = vmatpush1.msra.mxu0 %v1244
    %1462 = vmatprep.subr.mxu0 0.0
    %1463 = vmatpush1.msra.mxu0 %v1245
    %1464 = vmatprep.subr.mxu0 0.0
    %1465 = vmatpush1.msra.mxu0 %v1246
    %1466 = vmatprep.subr.mxu0 0.0
    %1467 = vmatpush1.msra.mxu0 %v1247
    %1468 = vmatprep.subr.mxu0 0.0
    %1469 = vmatpush1.msra.mxu0 %v1248
    %1470 = vmatprep.subr.mxu0 0.0
    %1471 = vmatpush1.msra.mxu0 %v1249
    %1472 = vmatprep.subr.mxu0 0.0
    %1473 = vmatpush1.msra.mxu0 %v1250
    %1474 = vmatprep.subr.mxu0 0.0
    %1475 = vmatpush1.msra.mxu0 %v1251
    %1476 = vmatprep.subr.mxu0 0.0
    %1477 = vmatpush1.msra.mxu0 %v1252
    %1478 = vmatprep.subr.mxu0 0.0
    %1479 = vmatpush1.msra.mxu0 %v1253
    %1480 = vmatprep.subr.mxu0 0.0
    %1481 = vmatpush1.msra.mxu0 %v1254
    %1482 = vmatprep.subr.mxu0 0.0
    %1483 = vmatpush1.msra.mxu0 %v1255
    %1484 = vmatprep.subr.mxu0 0.0
    %1485 = vmatpush1.msra.mxu0 %v1256
    %1486 = vmatprep.subr.mxu0 0.0
    %1487 = vmatpush1.msra.mxu0 %v1257
    %1488 = vmatprep.subr.mxu0 0.0
    %1489 = vmatpush1.msra.mxu0 %v1258
    %1490 = vmatprep.subr.mxu0 0.0
    %1491 = vmatpush1.msra.mxu0 %v1259
    %1492 = vmatprep.subr.mxu0 0.0
    %1493 = vmatpush1.msra.mxu0 %v1260
    %1494 = vmatprep.subr.mxu0 0.0
    %1495 = vmatpush1.msra.mxu0 %v1261
    %1496 = vmatprep.subr.mxu0 0.0
    %1497 = vmatpush1.msra.mxu0 %v1262
    %1498 = vmatprep.subr.mxu0 0.0
    %1499 = vmatpush1.msra.mxu0 %v1263
    %1500 = vmatprep.subr.mxu0 0.0
    %1501 = vmatpush1.msra.mxu0 %v1264
    %1502 = vmatprep.subr.mxu0 0.0
    %1503 = vmatpush1.msra.mxu0 %v1265
    %1504 = vmatprep.mubr.f32.mxu0 %v1275
    %1505 = vmatmul.mubr.f32.gmra.mrb[0].mxu0 %v1274
    %v1506 = vpop.f32.mrb[0].mxu0
    %v1507 = vadd.f32 %v1432, %v1506
    %v1508 = vpop.f32.mrb[0].mxu0
    %1509 = vmatprep.mubr.f32.mxu0 %v1282
    %1510 = vmatmul.mubr.f32.gmra.mrb[0].mxu0 %v1281
    %v1511 = vpop.f32.mrb[0].mxu0
    %v1512 = vadd.f32 %v1437, %v1511
    %v1513 = vpop.f32.mrb[0].mxu0
    %1514 = vdwg.mxu0
    %1515 = vmatprep.subr.mxu0 0.0
    %1516 = vmatpush1.msra.mxu0 %v1266
    %1517 = vmatprep.subr.mxu0 0.0
    %1518 = vmatpush1.msra.mxu0 %v1267
    %1519 = vmatprep.subr.mxu0 0.0
    %1520 = vmatpush1.msra.mxu0 %v1268
    %1521 = vmatprep.subr.mxu0 0.0
    %1522 = vmatpush1.msra.mxu0 %v1269
    %1523 = vmatprep.subr.mxu0 0.0
    %1524 = vmatpush1.msra.mxu0 0.0
    %1525 = vmatprep.subr.mxu0 0.0
    %1526 = vmatpush1.msra.mxu0 0.0
    %1527 = vmatprep.subr.mxu0 0.0
    %1528 = vmatpush1.msra.mxu0 0.0
    %1529 = vmatprep.subr.mxu0 0.0
    %1530 = vmatpush1.msra.mxu0 0.0
    %1531 = vmatprep.subr.mxu0 0.0
    %1532 = vmatpush1.msra.mxu0 0.0
    %1533 = vmatprep.subr.mxu0 0.0
    %1534 = vmatpush1.msra.mxu0 0.0
    %1535 = vmatprep.subr.mxu0 0.0
    %1536 = vmatpush1.msra.mxu0 0.0
    %1537 = vmatprep.subr.mxu0 0.0
    %1538 = vmatpush1.msra.mxu0 0.0
    %1539 = vmatprep.subr.mxu0 0.0
    %1540 = vmatpush1.msra.mxu0 0.0
    %1541 = vmatprep.subr.mxu0 0.0
    %1542 = vmatpush1.msra.mxu0 0.0
    %1543 = vmatprep.subr.mxu0 0.0
    %1544 = vmatpush1.msra.mxu0 0.0
    %1545 = vmatprep.subr.mxu0 0.0
    %1546 = vmatpush1.msra.mxu0 0.0
    %1547 = vmatprep.subr.mxu0 0.0
    %1548 = vmatpush1.msra.mxu0 0.0
    %1549 = vmatprep.subr.mxu0 0.0
    %1550 = vmatpush1.msra.mxu0 0.0
    %1551 = vmatprep.subr.mxu0 0.0
    %1552 = vmatpush1.msra.mxu0 0.0
    %1553 = vmatprep.subr.mxu0 0.0
    %1554 = vmatpush1.msra.mxu0 0.0
    %1555 = vmatprep.subr.mxu0 0.0
    %1556 = vmatpush1.msra.mxu0 0.0
    %1557 = vmatprep.subr.mxu0 0.0
    %1558 = vmatpush1.msra.mxu0 0.0
    %1559 = vmatprep.subr.mxu0 0.0
    %1560 = vmatpush1.msra.mxu0 0.0
    %1561 = vmatprep.subr.mxu0 0.0
    %1562 = vmatpush1.msra.mxu0 0.0
    %1563 = vmatprep.subr.mxu0 0.0
    %1564 = vmatpush1.msra.mxu0 0.0
    %1565 = vmatprep.subr.mxu0 0.0
    %1566 = vmatpush1.msra.mxu0 0.0
    %1567 = vmatprep.subr.mxu0 0.0
    %1568 = vmatpush1.msra.mxu0 0.0
    %1569 = vmatprep.subr.mxu0 0.0
    %1570 = vmatpush1.msra.mxu0 0.0
    %1571 = vmatprep.subr.mxu0 0.0
    %1572 = vmatpush1.msra.mxu0 0.0
    %1573 = vmatprep.subr.mxu0 0.0
    %1574 = vmatpush1.msra.mxu0 0.0
    %1575 = vmatprep.subr.mxu0 0.0
    %1576 = vmatpush1.msra.mxu0 0.0
    %1577 = vmatprep.subr.mxu0 0.0
    %1578 = vmatpush1.msra.mxu0 0.0
    %1579 = vmatprep.mubr.f32.mxu0 0.0
    %1580 = vmatmul.mubr.f32.gmra.mrb[0].mxu0 %v1285
    %v1581 = vpop.f32.mrb[0].mxu0
    %v1582 = vadd.f32 %v1507, %v1581
    %v1583 = vpop.f32.mrb[0].mxu0
    %1584 = vmatprep.mubr.f32.mxu0 0.0
    %1585 = vmatmul.mubr.f32.gmra.mrb[0].mxu0 %v1288
    %v1586 = vpop.f32.mrb[0].mxu0
    %v1587 = vadd.f32 %v1512, %v1586
    %v1588 = vpop.f32.mrb[0].mxu0
    %1589 = vdwg.mxu0
    %v1590 = vld [vmem:[%s6] sm:$0xff]
    %v1591 = vld [vmem:[%s6 + $0x8] sm:$0xff]
    %v1592 = vmul.f32 %v1582, %v1590
    %v1593 = vmul.f32 %v1587, %v1591
    %v1594 = vadd.f32 %v1592, %v1593
    %v1595 = vrot.slane %v1594, 4
    %v1596 = vadd.f32 %v1594, %v1595
    %v1597 = vrot.slane %v1596, 2
    %v1598 = vadd.f32 %v1596, %v1597
    %v1599 = vrot.slane %v1598, 1
    %v1600 = vadd.f32 %v1598, %v1599
    %1601 = vst [vmem:[#allocation4] sm:$0x1] %v1600
    // Predicated region
    $region30: #{tpu_custom_call.1} parent=1 // pred_check
      _
    $region31: #{tpu_custom_call.1} parent=1 // pred_check_branch
      %1603 = sbr.rel (0) target = $region33
    $region32: #{tpu_custom_call.1} parent=1 // pred_region
      %s1605 = ssub.s32 16, 16
      %1606 = vsyncadd [#allocation5], %s1605
      %s1608 = sshll.u32 [#allocation4], 4
      %s1609 = int_to_ptr.vmem [resolvable:$true] %s1608
      %1611 = dma.vmem_to_hbm [thread:$0]  %s1609, 16, %s7, [#allocation5]
    $region33: #{tpu_custom_call.1} parent=1 // pred_fallthru
      _
    // Predicated region
    $region34: #{tpu_custom_call.1} parent=1 // pred_check
      _
    $region35: #{tpu_custom_call.1} parent=1 // pred_check_branch
      %1613 = sbr.rel (0) target = $region37
    $region36: #{tpu_custom_call.1} parent=1 // pred_region
      %1614 = dma.done [#allocation5], 16
    $region37: #{tpu_custom_call.1} parent=1 // pred_fallthru
      _
    %1615 = vsyncpa [#allocation5], 1

</llo_original>
